<compile_context>
chip_gen: v7x
topology: tpu7x:2x2x1
jax: 0.10.0
libtpu: 0.0.40
codegen_flags: <defaults>
</compile_context>

<pallas_src>
import functools

import jax
import jax.numpy as jnp
from jax import lax
from jax.experimental import pallas as pl
from jax.experimental.pallas import tpu as pltpu

BN_EPS = 1e-5


def _largest_divisor_leq(n, cap):
    cap = max(1, min(n, cap))
    for d in range(cap, 0, -1):
        if n % d == 0:
            return d
    return 1


def _pick_tile_h(h_out, w_out, target_rows=512):
    return _largest_divisor_leq(h_out, max(1, target_rows // max(w_out, 1)))


def _vmem_cap_bytes():
    try:
        cap = getattr(pltpu.get_tpu_info(), "vmem_capacity_bytes", None)
        if cap:
            return int(cap)
    except Exception:
        pass
    return 64 * 1024 * 1024          # conservative fallback (safe on v7x)


def _vmem_limit(est_bytes):
    cap = int(0.75 * _vmem_cap_bytes())
    return int(min(max(2 * est_bytes, 32 * 1024 * 1024), cap))


def conv_bn_relu6(x_nchw, weight, gamma, beta, *, stride=1, padding=1,
                  dilation=1, groups=1, tile_h=None,
                  compute_dtype=jnp.bfloat16):
    """x_nchw: (N, C_in, H, W); weight: (C_out, C_in, KH, KW) (PyTorch layout)."""
    if dilation != 1 or groups != 1:
        # TODO(synk): dilated / grouped conv variants not implemented in the fused path.
        raise NotImplementedError("conv_bn_relu6: only dilation=1, groups=1 supported")

    N, C_in, H, W = x_nchw.shape
    C_out, C_in_w, KH, KW = weight.shape
    assert C_in_w == C_in, (C_in_w, C_in)

    H_out = (H + 2 * padding - KH) // stride + 1
    W_out = (W + 2 * padding - KW) // stride + 1
    H_pad, W_pad = H + 2 * padding, W + 2 * padding

    if tile_h is None:
        tile_h = _pick_tile_h(H_out, W_out)
    assert H_out % tile_h == 0, (H_out, tile_h)
    num_ht = H_out // tile_h
    tile_m = tile_h * W_out                  # matmul rows per grid step
    T = N * num_ht                           # total conv tiles
    Kdim = KH * KW * C_in                    # fused contraction size

    cdt = jnp.dtype(compute_dtype)
    itemsize = cdt.itemsize

    # ---------------- layout prep (cheap XLA glue) ----------------
    # NCHW -> NHWC, zero-pad spatial dims, cast MXU operands to compute dtype.
    x = jnp.transpose(x_nchw, (0, 2, 3, 1)).astype(cdt)
    x_pad = jnp.pad(x, ((0, 0), (padding, padding), (padding, padding), (0, 0)))

    # (C_out, C_in, KH, KW) -> (KH, KW, C_in, C_out) -> (KH*KW*C_in, C_out).
    w2d = jnp.transpose(weight, (2, 3, 1, 0)).astype(cdt).reshape(Kdim, C_out)

    # ---------------- Pass A: fused im2col conv (MXU) + per-tile BN partials ----------------
    def conv_stats_kernel(x_ref, w_ref, conv_ref, psum_ref, psq_ref):
        ht = pl.program_id(1)
        h0 = pl.multiple_of(ht * (tile_h * stride), tile_h * stride)

        pieces = []
        for kh in range(KH):
            for kw in range(KW):
                if stride == 1:
                    sl = x_ref[pl.ds(h0 + kh, tile_h), pl.ds(kw, W_out), :]
                else:
                    # Strided window load; avoids relayout of a materialized slab.
                    sl = x_ref[pl.ds(h0 + kh, tile_h, stride),
                               pl.ds(kw, W_out, stride), :]
                pieces.append(sl.reshape(tile_m, C_in))
        lhs = jnp.concatenate(pieces, axis=-1)            # (tile_m, KH*KW*C_in)

        # Single large-K MXU dot with f32 accumulation.
        conv = jnp.dot(lhs, w_ref[...], preferred_element_type=jnp.float32)

        # Per-tile BN partial statistics (f32, reduced later in XLA).
        psum_ref[...] = jnp.sum(conv, axis=0, keepdims=True)
        psq_ref[...] = jnp.sum(conv * conv, axis=0, keepdims=True)

        conv_ref[...] = conv.astype(conv_ref.dtype)

    est_a = (2 * H_pad * W_pad * C_in * itemsize          # resident padded image (x2 buf)
             + 2 * Kdim * C_out * itemsize                # weights
             + 2 * tile_m * C_out * itemsize              # conv out tile (x2 buf)
             + 4 * 2 * C_out * 4                          # psum/psq tiles
             + tile_m * Kdim * itemsize                   # im2col lhs working set
             + tile_m * C_out * 4)                        # f32 dot result

    conv_tiles, psum, psq = pl.pallas_call(
        conv_stats_kernel,
        out_shape=(
            jax.ShapeDtypeStruct((T, tile_m, C_out), cdt),
            jax.ShapeDtypeStruct((T, 1, C_out), jnp.float32),
            jax.ShapeDtypeStruct((T, 1, C_out), jnp.float32),
        ),
        grid_spec=pltpu.PrefetchScalarGridSpec(
            num_scalar_prefetch=0,
            grid=(N, num_ht),
            in_specs=[
                # Full padded image of batch n, resident across all h-tiles.
                pl.BlockSpec((None, H_pad, W_pad, C_in),
                             lambda n, ht: (n, 0, 0, 0)),
                pl.BlockSpec((Kdim, C_out), lambda n, ht: (0, 0)),
            ],
            out_specs=(
                pl.BlockSpec((None, tile_m, C_out),
                             lambda n, ht: (n * num_ht + ht, 0, 0)),
                pl.BlockSpec((None, 1, C_out),
                             lambda n, ht: (n * num_ht + ht, 0, 0)),
                pl.BlockSpec((None, 1, C_out),
                             lambda n, ht: (n * num_ht + ht, 0, 0)),
            ),
        ),
        compiler_params=pltpu.CompilerParams(
            dimension_semantics=("parallel", "parallel"),
            vmem_limit_bytes=_vmem_limit(est_a),
        ),
    )(x_pad, w2d)

    # ---------------- BN finalize (tiny, XLA) ----------------
    count = float(N * H_out * W_out)
    sum_c = jnp.sum(psum, axis=(0, 1))
    sq_c = jnp.sum(psq, axis=(0, 1))
    mean = sum_c / count
    var = jnp.maximum(sq_c / count - mean * mean, 0.0)
    inv_std = lax.rsqrt(var + BN_EPS)
    scale = (gamma.astype(jnp.float32) * inv_std).reshape(1, 1, C_out)
    shift = (beta.astype(jnp.float32) - mean * gamma.astype(jnp.float32)
             * inv_std).reshape(1, 1, C_out)

    # ---------------- Pass B: normalize + ReLU6 ----------------
    def norm_relu6_kernel(scale_ref, shift_ref, conv_ref, o_ref):
        y = conv_ref[...].astype(jnp.float32) * scale_ref[...] + shift_ref[...]
        o_ref[...] = jnp.clip(y, 0.0, 6.0)

    # Pass B block size decoupled from tile_h: group several conv tiles per step.
    per_tile_bytes = tile_m * C_out * (itemsize + 4)
    gb = _largest_divisor_leq(T, max(1, (8 << 20) // max(per_tile_bytes, 1)))
    est_b = 2 * gb * per_tile_bytes + 4 * C_out * 4

    out_tiles = pl.pallas_call(
        norm_relu6_kernel,
        out_shape=jax.ShapeDtypeStruct((T, tile_m, C_out), jnp.float32),
        grid_spec=pltpu.PrefetchScalarGridSpec(
            num_scalar_prefetch=0,
            grid=(T // gb,),
            in_specs=[
                pl.BlockSpec((1, 1, C_out), lambda i: (0, 0, 0)),
                pl.BlockSpec((1, 1, C_out), lambda i: (0, 0, 0)),
                pl.BlockSpec((gb, tile_m, C_out), lambda i: (i, 0, 0)),
            ],
            out_specs=pl.BlockSpec((gb, tile_m, C_out), lambda i: (i, 0, 0)),
        ),
        compiler_params=pltpu.CompilerParams(
            dimension_semantics=("parallel",),
            vmem_limit_bytes=_vmem_limit(est_b),
        ),
    )(scale, shift, conv_tiles)

    # (T, tile_m, C_out) flattens exactly to NHWC; final NCHW transpose stays in XLA.
    # TODO(synk): returning NHWC (or fusing the transpose into Pass B's out_spec)
    # would remove this epilogue read/write for very large outputs.
    out = out_tiles.reshape(N, H_out, W_out, C_out)
    return jnp.transpose(out, (0, 3, 1, 2)).astype(x_nchw.dtype)


def _reference(x_nchw, weight, gamma, beta, *, stride=1, padding=1):
    conv = lax.conv_general_dilated(
        x_nchw.astype(jnp.float32), weight.astype(jnp.float32),
        window_strides=(stride, stride),
        padding=((padding, padding), (padding, padding)),
        dimension_numbers=("NCHW", "OIHW", "NCHW"))
    mean = jnp.mean(conv, axis=(0, 2, 3), keepdims=True)
    var = jnp.mean((conv - mean) ** 2, axis=(0, 2, 3), keepdims=True)
    y = (conv - mean) * lax.rsqrt(var + BN_EPS)
    y = y * gamma.reshape(1, -1, 1, 1) + beta.reshape(1, -1, 1, 1)
    return jnp.clip(y, 0.0, 6.0)


if __name__ == "__main__":
    key = jax.random.PRNGKey(0)
    k_x, k_w, k_g, k_b = jax.random.split(key, 4)

    # ConvBNReLU6(c_in=4, c_out=8, kernel_size=3, stride=1, padding=1)
    N, C_in, H, W = 2, 4, 16, 16
    C_out, K = 8, 3

    x = jax.random.normal(k_x, (N, C_in, H, W), dtype=jnp.float32)
    weight = jax.random.normal(k_w, (C_out, C_in, K, K), dtype=jnp.float32) * 0.1
    gamma = jax.random.normal(k_g, (C_out,), dtype=jnp.float32) * 0.1 + 1.0
    beta = jax.random.normal(k_b, (C_out,), dtype=jnp.float32) * 0.1

    ref = _reference(x, weight, gamma, beta, stride=1, padding=1)

    # f32 compute path (multi h-tile grid): tight check against the XLA reference.
    fwd_f32 = jax.jit(functools.partial(conv_bn_relu6, stride=1, padding=1,
                                        tile_h=8, compute_dtype=jnp.float32))
    out_f32 = jax.block_until_ready(fwd_f32(x, weight, gamma, beta))
    assert out_f32.shape == (N, C_out, H, W), out_f32.shape
    assert jnp.allclose(out_f32, ref, atol=1e-4, rtol=1e-4), \
        ("f32 mismatch", float(jnp.max(jnp.abs(out_f32 - ref))))

    # Default bf16 MXU path (f32 accumulation, bf16 conv intermediate).
    fwd_bf16 = jax.jit(functools.partial(conv_bn_relu6, stride=1, padding=1,
                                         compute_dtype=jnp.bfloat16))
    out_bf16 = jax.block_until_ready(fwd_bf16(x, weight, gamma, beta))
    assert out_bf16.shape == (N, C_out, H, W), out_bf16.shape
    assert jnp.allclose(out_bf16, ref, atol=1e-1, rtol=1e-1), \
        ("bf16 mismatch", float(jnp.max(jnp.abs(out_bf16 - ref))))

    print("KERNEL_OK")
</pallas_src>

<mosaic_0001>
module attributes {stable_mosaic.version = 11 : i64} {
  func.func @conv_stats_kernel(%arg0: i32, %arg1: i32, %arg2: memref<1x18x18x4xf32, #tpu.memory_space<vmem>>, %arg3: memref<36x8xf32, #tpu.memory_space<vmem>>, %arg4: memref<1x128x8xf32, #tpu.memory_space<vmem>>, %arg5: memref<1x1x8xf32, #tpu.memory_space<vmem>>, %arg6: memref<1x1x8xf32, #tpu.memory_space<vmem>>) attributes {dimension_semantics = [#tpu.dimension_semantics<parallel>, #tpu.dimension_semantics<parallel>], iteration_bounds = array<i64: 2, 2>, scalar_prefetch = 0 : i64, scratch_operands = 0 : i64, tpu.core_type = #tpu.core_type<tc>, window_params = [{transform_indices = @transform_0, window_bounds = array<i64: 1, 18, 18, 4>}, {pipeline_mode = #tpu.pipeline_mode<synchronous>, transform_indices = @transform_1, window_bounds = array<i64: 36, 8>}, {transform_indices = @transform_2, window_bounds = array<i64: 1, 128, 8>}, {transform_indices = @transform_3, window_bounds = array<i64: 1, 1, 8>}, {transform_indices = @transform_4, window_bounds = array<i64: 1, 1, 8>}]} {
    %c8_i32 = arith.constant 8 : i32
    %0 = arith.muli %arg1, %c8_i32 : i32
    %1 = tpu.assume_multiple %0, 8 : i32
    %c0_i32 = arith.constant 0 : i32
    %2 = arith.addi %1, %c0_i32 : i32
    %c0 = arith.constant 0 : index
    %3 = arith.index_cast %2 : i32 to index
    %c0_0 = arith.constant 0 : index
    %c0_1 = arith.constant 0 : index
    %4 = vector.load %arg2[%c0, %3, %c0_0, %c0_1] : memref<1x18x18x4xf32, #tpu.memory_space<vmem>>, vector<1x8x16x4xf32>
    %5 = vector.shape_cast %4 : vector<1x8x16x4xf32> to vector<8x16x4xf32>
    %6 = vector.shape_cast %5 : vector<8x16x4xf32> to vector<128x4xf32>
    %c0_i32_2 = arith.constant 0 : i32
    %7 = arith.addi %1, %c0_i32_2 : i32
    %c0_3 = arith.constant 0 : index
    %8 = arith.index_cast %7 : i32 to index
    %c1 = arith.constant 1 : index
    %c0_4 = arith.constant 0 : index
    %9 = vector.load %arg2[%c0_3, %8, %c1, %c0_4] : memref<1x18x18x4xf32, #tpu.memory_space<vmem>>, vector<1x8x16x4xf32>
    %10 = vector.shape_cast %9 : vector<1x8x16x4xf32> to vector<8x16x4xf32>
    %11 = vector.shape_cast %10 : vector<8x16x4xf32> to vector<128x4xf32>
    %c0_i32_5 = arith.constant 0 : i32
    %12 = arith.addi %1, %c0_i32_5 : i32
    %c0_6 = arith.constant 0 : index
    %13 = arith.index_cast %12 : i32 to index
    %c2 = arith.constant 2 : index
    %c0_7 = arith.constant 0 : index
    %14 = vector.load %arg2[%c0_6, %13, %c2, %c0_7] : memref<1x18x18x4xf32, #tpu.memory_space<vmem>>, vector<1x8x16x4xf32>
    %15 = vector.shape_cast %14 : vector<1x8x16x4xf32> to vector<8x16x4xf32>
    %16 = vector.shape_cast %15 : vector<8x16x4xf32> to vector<128x4xf32>
    %c1_i32 = arith.constant 1 : i32
    %17 = arith.addi %1, %c1_i32 : i32
    %c0_8 = arith.constant 0 : index
    %18 = arith.index_cast %17 : i32 to index
    %c0_9 = arith.constant 0 : index
    %c0_10 = arith.constant 0 : index
    %19 = vector.load %arg2[%c0_8, %18, %c0_9, %c0_10] : memref<1x18x18x4xf32, #tpu.memory_space<vmem>>, vector<1x8x16x4xf32>
    %20 = vector.shape_cast %19 : vector<1x8x16x4xf32> to vector<8x16x4xf32>
    %21 = vector.shape_cast %20 : vector<8x16x4xf32> to vector<128x4xf32>
    %c1_i32_11 = arith.constant 1 : i32
    %22 = arith.addi %1, %c1_i32_11 : i32
    %c0_12 = arith.constant 0 : index
    %23 = arith.index_cast %22 : i32 to index
    %c1_13 = arith.constant 1 : index
    %c0_14 = arith.constant 0 : index
    %24 = vector.load %arg2[%c0_12, %23, %c1_13, %c0_14] : memref<1x18x18x4xf32, #tpu.memory_space<vmem>>, vector<1x8x16x4xf32>
    %25 = vector.shape_cast %24 : vector<1x8x16x4xf32> to vector<8x16x4xf32>
    %26 = vector.shape_cast %25 : vector<8x16x4xf32> to vector<128x4xf32>
    %c1_i32_15 = arith.constant 1 : i32
    %27 = arith.addi %1, %c1_i32_15 : i32
    %c0_16 = arith.constant 0 : index
    %28 = arith.index_cast %27 : i32 to index
    %c2_17 = arith.constant 2 : index
    %c0_18 = arith.constant 0 : index
    %29 = vector.load %arg2[%c0_16, %28, %c2_17, %c0_18] : memref<1x18x18x4xf32, #tpu.memory_space<vmem>>, vector<1x8x16x4xf32>
    %30 = vector.shape_cast %29 : vector<1x8x16x4xf32> to vector<8x16x4xf32>
    %31 = vector.shape_cast %30 : vector<8x16x4xf32> to vector<128x4xf32>
    %c2_i32 = arith.constant 2 : i32
    %32 = arith.addi %1, %c2_i32 : i32
    %c0_19 = arith.constant 0 : index
    %33 = arith.index_cast %32 : i32 to index
    %c0_20 = arith.constant 0 : index
    %c0_21 = arith.constant 0 : index
    %34 = vector.load %arg2[%c0_19, %33, %c0_20, %c0_21] : memref<1x18x18x4xf32, #tpu.memory_space<vmem>>, vector<1x8x16x4xf32>
    %35 = vector.shape_cast %34 : vector<1x8x16x4xf32> to vector<8x16x4xf32>
    %36 = vector.shape_cast %35 : vector<8x16x4xf32> to vector<128x4xf32>
    %c2_i32_22 = arith.constant 2 : i32
    %37 = arith.addi %1, %c2_i32_22 : i32
    %c0_23 = arith.constant 0 : index
    %38 = arith.index_cast %37 : i32 to index
    %c1_24 = arith.constant 1 : index
    %c0_25 = arith.constant 0 : index
    %39 = vector.load %arg2[%c0_23, %38, %c1_24, %c0_25] : memref<1x18x18x4xf32, #tpu.memory_space<vmem>>, vector<1x8x16x4xf32>
    %40 = vector.shape_cast %39 : vector<1x8x16x4xf32> to vector<8x16x4xf32>
    %41 = vector.shape_cast %40 : vector<8x16x4xf32> to vector<128x4xf32>
    %c2_i32_26 = arith.constant 2 : i32
    %42 = arith.addi %1, %c2_i32_26 : i32
    %c0_27 = arith.constant 0 : index
    %43 = arith.index_cast %42 : i32 to index
    %c2_28 = arith.constant 2 : index
    %c0_29 = arith.constant 0 : index
    %44 = vector.load %arg2[%c0_27, %43, %c2_28, %c0_29] : memref<1x18x18x4xf32, #tpu.memory_space<vmem>>, vector<1x8x16x4xf32>
    %45 = vector.shape_cast %44 : vector<1x8x16x4xf32> to vector<8x16x4xf32>
    %46 = vector.shape_cast %45 : vector<8x16x4xf32> to vector<128x4xf32>
    %47 = tpu.concatenate %6, %11, %16, %21, %26, %31, %36, %41, %46 in 1 : vector<128x4xf32>, vector<128x4xf32>, vector<128x4xf32>, vector<128x4xf32>, vector<128x4xf32>, vector<128x4xf32>, vector<128x4xf32>, vector<128x4xf32>, vector<128x4xf32> -> vector<128x36xf32>
    %c0_30 = arith.constant 0 : index
    %c0_31 = arith.constant 0 : index
    %48 = vector.load %arg3[%c0_30, %c0_31] : memref<36x8xf32, #tpu.memory_space<vmem>>, vector<36x8xf32>
    %cst = arith.constant dense<0.000000e+00> : vector<128x8xf32>
    %49 = tpu.matmul %47, %48, %cst {dimension_numbers = #tpu.dot_dimension_numbers<[1], [0], [0], [1], [0, 0, 1, 1], [], []>} : vector<128x36xf32>, vector<36x8xf32>, vector<128x8xf32> -> vector<128x8xf32>
    %cst_32 = arith.constant dense<0.000000e+00> : vector<8xf32>
    %50 = vector.multi_reduction <add>, %49, %cst_32 [0] : vector<128x8xf32> to vector<8xf32>
    %51 = vector.shape_cast %50 : vector<8xf32> to vector<1x8xf32>
    %c0_33 = arith.constant 0 : index
    %c0_34 = arith.constant 0 : index
    %c0_35 = arith.constant 0 : index
    %52 = vector.load %arg5[%c0_33, %c0_34, %c0_35] : memref<1x1x8xf32, #tpu.memory_space<vmem>>, vector<1x1x8xf32>
    %53 = vector.shape_cast %52 : vector<1x1x8xf32> to vector<1x8xf32>
    %54 = vector.shape_cast %51 : vector<1x8xf32> to vector<1x1x8xf32>
    tpu.vector_store %arg5[%c0_33, %c0_34, %c0_35], %54 {strides = array<i32>} : memref<1x1x8xf32, #tpu.memory_space<vmem>>, vector<1x1x8xf32>,
    %55 = arith.mulf %49, %49 : vector<128x8xf32>
    %cst_36 = arith.constant dense<0.000000e+00> : vector<8xf32>
    %56 = vector.multi_reduction <add>, %55, %cst_36 [0] : vector<128x8xf32> to vector<8xf32>
    %57 = vector.shape_cast %56 : vector<8xf32> to vector<1x8xf32>
    %c0_37 = arith.constant 0 : index
    %c0_38 = arith.constant 0 : index
    %c0_39 = arith.constant 0 : index
    %58 = vector.load %arg6[%c0_37, %c0_38, %c0_39] : memref<1x1x8xf32, #tpu.memory_space<vmem>>, vector<1x1x8xf32>
    %59 = vector.shape_cast %58 : vector<1x1x8xf32> to vector<1x8xf32>
    %60 = vector.shape_cast %57 : vector<1x8xf32> to vector<1x1x8xf32>
    tpu.vector_store %arg6[%c0_37, %c0_38, %c0_39], %60 {strides = array<i32>} : memref<1x1x8xf32, #tpu.memory_space<vmem>>, vector<1x1x8xf32>,
    %c0_40 = arith.constant 0 : index
    %c0_41 = arith.constant 0 : index
    %c0_42 = arith.constant 0 : index
    %61 = vector.load %arg4[%c0_40, %c0_41, %c0_42] : memref<1x128x8xf32, #tpu.memory_space<vmem>>, vector<1x128x8xf32>
    %62 = vector.shape_cast %61 : vector<1x128x8xf32> to vector<128x8xf32>
    %63 = vector.shape_cast %49 : vector<128x8xf32> to vector<1x128x8xf32>
    tpu.vector_store %arg4[%c0_40, %c0_41, %c0_42], %63 {strides = array<i32>} : memref<1x128x8xf32, #tpu.memory_space<vmem>>, vector<1x128x8xf32>,
    return
  }
  func.func @transform_0(%arg0: i32, %arg1: i32) -> (i32, i32, i32, i32) {
    %c0_i32 = arith.constant 0 : i32
    %c0_i32_0 = arith.constant 0 : i32
    %c0_i32_1 = arith.constant 0 : i32
    %c0_i32_2 = arith.constant 0 : i32
    return %arg0, %c0_i32, %c0_i32_0, %c0_i32_1 : i32, i32, i32, i32
  }
  func.func @transform_1(%arg0: i32, %arg1: i32) -> (i32, i32) {
    %c0_i32 = arith.constant 0 : i32
    %c0_i32_0 = arith.constant 0 : i32
    %c0_i32_1 = arith.constant 0 : i32
    return %c0_i32, %c0_i32_0 : i32, i32
  }
  func.func @transform_2(%arg0: i32, %arg1: i32) -> (i32, i32, i32) {
    %c2_i32 = arith.constant 2 : i32
    %0 = arith.muli %arg0, %c2_i32 : i32
    %1 = arith.addi %0, %arg1 : i32
    %c0_i32 = arith.constant 0 : i32
    %c0_i32_0 = arith.constant 0 : i32
    %c0_i32_1 = arith.constant 0 : i32
    return %1, %c0_i32, %c0_i32_0 : i32, i32, i32
  }
  func.func @transform_3(%arg0: i32, %arg1: i32) -> (i32, i32, i32) {
    %c2_i32 = arith.constant 2 : i32
    %0 = arith.muli %arg0, %c2_i32 : i32
    %1 = arith.addi %0, %arg1 : i32
    %c0_i32 = arith.constant 0 : i32
    %c0_i32_0 = arith.constant 0 : i32
    %c0_i32_1 = arith.constant 0 : i32
    return %1, %c0_i32, %c0_i32_0 : i32, i32, i32
  }
  func.func @transform_4(%arg0: i32, %arg1: i32) -> (i32, i32, i32) {
    %c2_i32 = arith.constant 2 : i32
    %0 = arith.muli %arg0, %c2_i32 : i32
    %1 = arith.addi %0, %arg1 : i32
    %c0_i32 = arith.constant 0 : i32
    %c0_i32_0 = arith.constant 0 : i32
    %c0_i32_1 = arith.constant 0 : i32
    return %1, %c0_i32, %c0_i32_0 : i32, i32, i32
  }
}

module attributes {stable_mosaic.version = 11 : i64} {
  func.func @norm_relu6_kernel(%arg0: i32, %arg1: memref<1x1x8xf32, #tpu.memory_space<vmem>>, %arg2: memref<1x1x8xf32, #tpu.memory_space<vmem>>, %arg3: memref<4x128x8xf32, #tpu.memory_space<vmem>>, %arg4: memref<4x128x8xf32, #tpu.memory_space<vmem>>) attributes {dimension_semantics = [#tpu.dimension_semantics<parallel>], iteration_bounds = array<i64: 1>, scalar_prefetch = 0 : i64, scratch_operands = 0 : i64, tpu.core_type = #tpu.core_type<tc>, window_params = [{pipeline_mode = #tpu.pipeline_mode<synchronous>, transform_indices = @transform_0, window_bounds = array<i64: 1, 1, 8>}, {pipeline_mode = #tpu.pipeline_mode<synchronous>, transform_indices = @transform_1, window_bounds = array<i64: 1, 1, 8>}, {transform_indices = @transform_2, window_bounds = array<i64: 4, 128, 8>}, {transform_indices = @transform_3, window_bounds = array<i64: 4, 128, 8>}]} {
    %c0 = arith.constant 0 : index
    %c0_0 = arith.constant 0 : index
    %c0_1 = arith.constant 0 : index
    %0 = vector.load %arg3[%c0, %c0_0, %c0_1] : memref<4x128x8xf32, #tpu.memory_space<vmem>>, vector<4x128x8xf32>
    %c0_2 = arith.constant 0 : index
    %c0_3 = arith.constant 0 : index
    %c0_4 = arith.constant 0 : index
    %1 = vector.load %arg1[%c0_2, %c0_3, %c0_4] : memref<1x1x8xf32, #tpu.memory_space<vmem>>, vector<1x1x8xf32>
    %2 = vector.broadcast %1 : vector<1x1x8xf32> to vector<4x128x8xf32>
    %3 = arith.mulf %0, %2 : vector<4x128x8xf32>
    %c0_5 = arith.constant 0 : index
    %c0_6 = arith.constant 0 : index
    %c0_7 = arith.constant 0 : index
    %4 = vector.load %arg2[%c0_5, %c0_6, %c0_7] : memref<1x1x8xf32, #tpu.memory_space<vmem>>, vector<1x1x8xf32>
    %5 = vector.broadcast %4 : vector<1x1x8xf32> to vector<4x128x8xf32>
    %6 = arith.addf %3, %5 : vector<4x128x8xf32>
    %cst = arith.constant 0.000000e+00 : f32
    %cst_8 = arith.constant 6.000000e+00 : f32
    %7 = vector.broadcast %cst : f32 to vector<4x128x8xf32>
    %8 = arith.maximumf %7, %6 : vector<4x128x8xf32>
    %9 = vector.broadcast %cst_8 : f32 to vector<4x128x8xf32>
    %10 = arith.minimumf %9, %8 : vector<4x128x8xf32>
    %c0_9 = arith.constant 0 : index
    %c0_10 = arith.constant 0 : index
    %c0_11 = arith.constant 0 : index
    %11 = vector.load %arg4[%c0_9, %c0_10, %c0_11] : memref<4x128x8xf32, #tpu.memory_space<vmem>>, vector<4x128x8xf32>
    tpu.vector_store %arg4[%c0_9, %c0_10, %c0_11], %10 {strides = array<i32>} : memref<4x128x8xf32, #tpu.memory_space<vmem>>, vector<4x128x8xf32>,
    return
  }
  func.func @transform_0(%arg0: i32) -> (i32, i32, i32) {
    %c0_i32 = arith.constant 0 : i32
    %c0_i32_0 = arith.constant 0 : i32
    %c0_i32_1 = arith.constant 0 : i32
    %c0_i32_2 = arith.constant 0 : i32
    return %c0_i32, %c0_i32_0, %c0_i32_1 : i32, i32, i32
  }
  func.func @transform_1(%arg0: i32) -> (i32, i32, i32) {
    %c0_i32 = arith.constant 0 : i32
    %c0_i32_0 = arith.constant 0 : i32
    %c0_i32_1 = arith.constant 0 : i32
    %c0_i32_2 = arith.constant 0 : i32
    return %c0_i32, %c0_i32_0, %c0_i32_1 : i32, i32, i32
  }
  func.func @transform_2(%arg0: i32) -> (i32, i32, i32) {
    %c0_i32 = arith.constant 0 : i32
    %c0_i32_0 = arith.constant 0 : i32
    %c0_i32_1 = arith.constant 0 : i32
    return %arg0, %c0_i32, %c0_i32_0 : i32, i32, i32
  }
  func.func @transform_3(%arg0: i32) -> (i32, i32, i32) {
    %c0_i32 = arith.constant 0 : i32
    %c0_i32_0 = arith.constant 0 : i32
    %c0_i32_1 = arith.constant 0 : i32
    return %arg0, %c0_i32, %c0_i32_0 : i32, i32, i32
  }
}

</mosaic_0001>

<llo_original>
// kernel: conv_bn_relu6.2
$region0: #{conv_bn_relu6.2}
  #allocation0 [shape = 'u32[]', space=smem, size = 0x4, offset = 0x4, fixed_abs, tag = 'smem constant byte address 0x4 - core index']
  #allocation1 [shape = 'u32[144,128]{1,0:T(1,128)}', space=vmem, size = 0x12000, scoped, tag = 'internal scratch']
  %s0 = inlined_call_operand.vmem [shape: f32[2,18,18,4], index: 0, kind: input, shape index: {}]
  %s1 = inlined_call_operand.vmem [shape: f32[36,8], index: 1, kind: input, shape index: {}]
  %s2 = inlined_call_operand.vmem [shape: f32[4,128,8], index: 2, kind: output, shape index: {0}]
  %s3 = inlined_call_operand.vmem [shape: f32[4,1,8], index: 3, kind: output, shape index: {1}]
  %s4 = inlined_call_operand.vmem [shape: f32[4,1,8], index: 4, kind: output, shape index: {2}]
  %5 = xla_tuple %s2, %s3, %s4
  %s6 = sld [smem:[#allocation0]]
  $region57: #{conv_bn_relu6.2} parent=0
    _
  %s8 = ssub.s32 1, %s6
  %s9 = scalar_select 0, %s8, %s6
  loop: start=0, step=1, limit=6
  $region2: #{conv_bn_relu6.2} parent=0 // loop_pre_header
    _
  $region3: #{conv_bn_relu6.2} parent=0 // loop_header
    %s11 = sphi 0, %s15
    %p12 = scmp.ge.s32.totalorder %s11, 6
    %s18 = sphi 0, %s30
    %s19 = sphi 0, %s26
    %s20 = sphi 0, %s18
    %s21 = sphi 0, %s19
    %s22 = sphi 0, %s20
    %s23 = sphi 0, %s21
    %s33 = sphi 0, %s35
    %s36 = sphi 0, %s33
    %s37 = sphi 0, %s36
    %s53 = sphi 0, %s37
    %s57 = sphi 0, %s57
    %s59 = sphi 0, %s57
    %s60 = sphi 0, %s59
    %s74 = sphi 0, %s60
    %s84 = sphi 0, %s86
    %s87 = sphi 0, %s84
    %s88 = sphi 0, %s87
    %s104 = sphi 0, %s88
    %s114 = sphi 0, %s116
    %s117 = sphi 0, %s114
    %s118 = sphi 0, %s117
    %s134 = sphi 0, %s118
    %s144 = sphi 0, %s146
    %s147 = sphi 0, %s144
    %s148 = sphi 0, %s147
    %s164 = sphi 0, %s148
  $region4: #{conv_bn_relu6.2} parent=0 // loop_header_branch
    %14 = sbr.rel (%p12) target = $region8
  $region5: #{conv_bn_relu6.2} parent=0 // loop_body
    %s16 = ssub.s32 %s11, 1
    %s17 = ssub.s32 %s11, 2
    %s24 = sadd.s32 1, %s19
    %p25 = scmp.ge.s32.totalorder %s24, 2
    %s26 = scalar_select %p25, 0, %s24
    %s27 = sadd.s32 1, %s18
    %s28 = scalar_select %p25, %s27, %s18
    %p29 = scmp.ge.s32.totalorder %s28, 2
    %s30 = scalar_select %p29, 0, %s28
    %s31 = ssub.s32 %s18, %s30
    %p32 = scmp.eq.s32.totalorder %s31, 0
    %s34 = sadd.s32 %s33, 1
    %s35 = scalar_select %p32, %s33, %s34
    %p38 = pneg %p32
    %p39 = scmp.eq.s32.totalorder %s11, 3
    %p40 = por %p38, %p39
    %p41 = scmp.ne.s32.totalorder %s33, %s36
    %p42 = scmp.eq.s32.totalorder %s11, 0
    %p43 = por %p41, %p42
    %p44 = scmp.ne.s32.totalorder %s33, %s36
    %p45 = scmp.eq.s32.totalorder %s16, 3
    %p46 = por %p44, %p45
    %p47 = scmp.ne.s32.totalorder %s36, %s37
    %p48 = scmp.eq.s32.totalorder %s16, 0
    %p49 = por %p47, %p48
    %p50 = scmp.ne.s32.totalorder %s36, %s37
    %p51 = scmp.eq.s32.totalorder %s17, 3
    %p52 = por %p50, %p51
    %p54 = scmp.ne.s32.totalorder %s37, %s53
    %p55 = scmp.eq.s32.totalorder %s17, 0
    %p56 = por %p54, %p55
    %s58 = sadd.s32 %s57, 1
    %p61 = scmp.eq.s32.totalorder %s11, 3
    %p62 = scmp.ne.s32.totalorder %s57, %s59
    %p63 = scmp.eq.s32.totalorder %s11, 0
    %p64 = por %p62, %p63
    %p65 = scmp.ne.s32.totalorder %s57, %s59
    %p66 = scmp.eq.s32.totalorder %s16, 3
    %p67 = por %p65, %p66
    %p68 = scmp.ne.s32.totalorder %s59, %s60
    %p69 = scmp.eq.s32.totalorder %s16, 0
    %p70 = por %p68, %p69
    %p71 = scmp.ne.s32.totalorder %s59, %s60
    %p72 = scmp.eq.s32.totalorder %s17, 3
    %p73 = por %p71, %p72
    %p75 = scmp.ne.s32.totalorder %s60, %s74
    %p76 = scmp.eq.s32.totalorder %s17, 0
    %p77 = por %p75, %p76
    %s78 = smul.u32 %s18, 2
    %s79 = sadd.s32 %s78, %s19
    %s80 = smul.u32 %s30, 2
    %s81 = sadd.s32 %s80, %s26
    %s82 = ssub.s32 %s79, %s81
    %p83 = scmp.eq.s32.totalorder %s82, 0
    %s85 = sadd.s32 %s84, 1
    %s86 = scalar_select %p83, %s84, %s85
    %p89 = pneg %p83
    %p90 = scmp.eq.s32.totalorder %s11, 3
    %p91 = por %p89, %p90
    %p92 = scmp.ne.s32.totalorder %s84, %s87
    %p93 = scmp.eq.s32.totalorder %s11, 0
    %p94 = por %p92, %p93
    %p95 = scmp.ne.s32.totalorder %s84, %s87
    %p96 = scmp.eq.s32.totalorder %s16, 3
    %p97 = por %p95, %p96
    %p98 = scmp.ne.s32.totalorder %s87, %s88
    %p99 = scmp.eq.s32.totalorder %s16, 0
    %p100 = por %p98, %p99
    %p101 = scmp.ne.s32.totalorder %s87, %s88
    %p102 = scmp.eq.s32.totalorder %s17, 3
    %p103 = por %p101, %p102
    %p105 = scmp.ne.s32.totalorder %s88, %s104
    %p106 = scmp.eq.s32.totalorder %s17, 0
    %p107 = por %p105, %p106
    %s108 = smul.u32 %s18, 2
    %s109 = sadd.s32 %s108, %s19
    %s110 = smul.u32 %s30, 2
    %s111 = sadd.s32 %s110, %s26
    %s112 = ssub.s32 %s109, %s111
    %p113 = scmp.eq.s32.totalorder %s112, 0
    %s115 = sadd.s32 %s114, 1
    %s116 = scalar_select %p113, %s114, %s115
    %p119 = pneg %p113
    %p120 = scmp.eq.s32.totalorder %s11, 3
    %p121 = por %p119, %p120
    %p122 = scmp.ne.s32.totalorder %s114, %s117
    %p123 = scmp.eq.s32.totalorder %s11, 0
    %p124 = por %p122, %p123
    %p125 = scmp.ne.s32.totalorder %s114, %s117
    %p126 = scmp.eq.s32.totalorder %s16, 3
    %p127 = por %p125, %p126
    %p128 = scmp.ne.s32.totalorder %s117, %s118
    %p129 = scmp.eq.s32.totalorder %s16, 0
    %p130 = por %p128, %p129
    %p131 = scmp.ne.s32.totalorder %s117, %s118
    %p132 = scmp.eq.s32.totalorder %s17, 3
    %p133 = por %p131, %p132
    %p135 = scmp.ne.s32.totalorder %s118, %s134
    %p136 = scmp.eq.s32.totalorder %s17, 0
    %p137 = por %p135, %p136
    %s138 = smul.u32 %s18, 2
    %s139 = sadd.s32 %s138, %s19
    %s140 = smul.u32 %s30, 2
    %s141 = sadd.s32 %s140, %s26
    %s142 = ssub.s32 %s139, %s141
    %p143 = scmp.eq.s32.totalorder %s142, 0
    %s145 = sadd.s32 %s144, 1
    %s146 = scalar_select %p143, %s144, %s145
    %p149 = pneg %p143
    %p150 = scmp.eq.s32.totalorder %s11, 3
    %p151 = por %p149, %p150
    %p152 = scmp.ne.s32.totalorder %s144, %s147
    %p153 = scmp.eq.s32.totalorder %s11, 0
    %p154 = por %p152, %p153
    %p155 = scmp.ne.s32.totalorder %s144, %s147
    %p156 = scmp.eq.s32.totalorder %s16, 3
    %p157 = por %p155, %p156
    %p158 = scmp.ne.s32.totalorder %s147, %s148
    %p159 = scmp.eq.s32.totalorder %s16, 0
    %p160 = por %p158, %p159
    %p161 = scmp.ne.s32.totalorder %s147, %s148
    %p162 = scmp.eq.s32.totalorder %s17, 3
    %p163 = por %p161, %p162
    %p165 = scmp.ne.s32.totalorder %s148, %s164
    %p166 = scmp.eq.s32.totalorder %s17, 0
    %p167 = por %p165, %p166
    %p168 = scmp.le.s32.totalorder 1, %s11
    %p169 = scmp.lt.s32.totalorder %s11, 5
    %p170 = pnand %p168, %p169
    %p171 = pneg %p170
    // Predicated region
    $region9: #{conv_bn_relu6.2} parent=5 // pred_check
      _
    $region10: #{conv_bn_relu6.2} parent=5 // pred_check_branch
      %173 = sbr.rel (%p170) target = $region12
    $region11: #{conv_bn_relu6.2} parent=5 // pred_region
      %s174 = ssub.s32 %s11, 1
      // Predicated region
      $region13: #{conv_bn_relu6.2} parent=11 // pred_check
        %p175 = pneg %p70
      $region14: #{conv_bn_relu6.2} parent=11 // pred_check_branch
        %177 = sbr.rel (%p175) target = $region16
      $region15: #{conv_bn_relu6.2} parent=11 // pred_region
        _
      $region16: #{conv_bn_relu6.2} parent=11 // pred_fallthru
        _
    $region12: #{conv_bn_relu6.2} parent=5 // pred_fallthru
      _
    %p178 = scmp.lt.s32.totalorder %s11, 4
    // Predicated region
    $region17: #{conv_bn_relu6.2} parent=5 // pred_check
      %p179 = pneg %p178
    $region18: #{conv_bn_relu6.2} parent=5 // pred_check_branch
      %181 = sbr.rel (%p179) target = $region20
    $region19: #{conv_bn_relu6.2} parent=5 // pred_region
      // Predicated region
      $region21: #{conv_bn_relu6.2} parent=19 // pred_check
        %p182 = pneg %p43
      $region22: #{conv_bn_relu6.2} parent=19 // pred_check_branch
        %184 = sbr.rel (%p182) target = $region24
      $region23: #{conv_bn_relu6.2} parent=19 // pred_region
        %p185 = scmp.lt.s32.totalorder %s18, 1
        %s186 = scalar_select %p185, %s18, 1
        %s187 = smul.addr %s186, 54
        %s188 = smul.addr %s187, 8
        %s189 = scalar_lea.vmem %s0, %s188
      $region24: #{conv_bn_relu6.2} parent=19 // pred_fallthru
        _
    $region20: #{conv_bn_relu6.2} parent=5 // pred_fallthru
      _
    %p190 = scmp.le.s32.totalorder 1, %s11
    %p191 = scmp.lt.s32.totalorder %s11, 5
    %p192 = pnand %p190, %p191
    %p193 = pneg %p192
    // Predicated region
    $region25: #{conv_bn_relu6.2} parent=5 // pred_check
      _
    $region26: #{conv_bn_relu6.2} parent=5 // pred_check_branch
      %195 = sbr.rel (%p192) target = $region28
    $region27: #{conv_bn_relu6.2} parent=5 // pred_region
      %s196 = ssub.s32 %s11, 1
      %p197 = scmp.lt.s32.totalorder %s20, 1
      %s198 = scalar_select %p197, %s20, 1
      %s199 = smul.addr %s198, 54
      %s200 = smul.addr %s199, 8
      %s201 = scalar_lea.vmem %s0, %s200
      %p202 = pneg %p49
      %p203 = pneg %p46
      %p204 = pneg %p70
      %p205 = pneg %p67
      %p206 = pneg %p100
      %p207 = pneg %p97
      %s208 = smul.u32 %s20, 2
      %s209 = sadd.s32 %s208, %s21
      %p210 = scmp.lt.s32.totalorder %s209, 3
      %s211 = scalar_select %p210, %s209, 3
      %s212 = smul.addr %s211, 16
      %s213 = smul.addr %s212, 8
      %s214 = scalar_lea.vmem %s2, %s213
      %p215 = pneg %p130
      %p216 = pneg %p127
      %s217 = smul.u32 %s20, 2
      %s218 = sadd.s32 %s217, %s21
      %p219 = scmp.lt.s32.totalorder %s218, 3
      %s220 = scalar_select %p219, %s218, 3
      %s221 = scalar_lea.vmem %s3, %s220
      %p222 = pneg %p160
      %p223 = pneg %p157
      %s224 = smul.u32 %s20, 2
      %s225 = sadd.s32 %s224, %s21
      %p226 = scmp.lt.s32.totalorder %s225, 3
      %s227 = scalar_select %p226, %s225, 3
      %s228 = scalar_lea.vmem %s4, %s227
      %p229 = scmp.lt.s32.totalorder %s20, 1
      %s230 = scalar_select %p229, %s20, 1
      %s231 = smul.addr %s230, 54
      %s232 = smul.addr %s231, 8
      %s233 = scalar_lea.vmem %s0, %s232
      %s234 = smul.u32 %s20, 2
      %s235 = sadd.s32 %s234, %s21
      %p236 = scmp.lt.s32.totalorder %s235, 3
      %s237 = scalar_select %p236, %s235, 3
      %s238 = smul.addr %s237, 16
      %s239 = smul.addr %s238, 8
      %s240 = scalar_lea.vmem %s2, %s239
      %s241 = smul.u32 %s20, 2
      %s242 = sadd.s32 %s241, %s21
      %s243 = smul.u32 %s20, 2
      %s244 = sadd.s32 %s243, %s21
      %p245 = scmp.lt.s32.totalorder %s244, 3
      %s246 = scalar_select %p245, %s244, 3
      %s247 = scalar_lea.vmem %s3, %s246
      %s248 = smul.u32 %s20, 2
      %s249 = sadd.s32 %s248, %s21
      %s250 = smul.u32 %s20, 2
      %s251 = sadd.s32 %s250, %s21
      %p252 = scmp.lt.s32.totalorder %s251, 3
      %s253 = scalar_select %p252, %s251, 3
      %s254 = scalar_lea.vmem %s4, %s253
      %s255 = smul.u32 %s20, 2
      %s256 = sadd.s32 %s255, %s21
      %s257 = smul.u32 %s21, 8
      %s258 = smul.u32 %s257, 24
      %s259 = scalar_lea.vmem %s233, %s258
      %v260 = vld [vmem:[%s259] sm:$0xff]
      %v261 = vld [vmem:[%s259 + $0x8] sm:$0xff]
      %v262 = vld [vmem:[%s259 + $0x18] sm:$0xff]
      %v263 = vld [vmem:[%s259 + $0x20] sm:$0xff]
      %v264 = vld [vmem:[%s259 + $0x30] sm:$0xff]
      %v265 = vld [vmem:[%s259 + $0x38] sm:$0xff]
      %v266 = vld [vmem:[%s259 + $0x48] sm:$0xff]
      %v267 = vld [vmem:[%s259 + $0x50] sm:$0xff]
      %v268 = vld [vmem:[%s259 + $0x60] sm:$0xff]
      %v269 = vld [vmem:[%s259 + $0x68] sm:$0xff]
      %v270 = vld [vmem:[%s259 + $0x78] sm:$0xff]
      %v271 = vld [vmem:[%s259 + $0x80] sm:$0xff]
      %v272 = vld [vmem:[%s259 + $0x90] sm:$0xff]
      %v273 = vld [vmem:[%s259 + $0x98] sm:$0xff]
      %v274 = vld [vmem:[%s259 + $0xa8] sm:$0xff]
      %v275 = vld [vmem:[%s259 + $0xb0] sm:$0xff]
      %v276 = vld [vmem:[%s259 + $0x1] sm:$0xff]
      %v277 = vld [vmem:[%s259 + $0x9] sm:$0xff]
      %v278 = vld [vmem:[%s259 + $0x19] sm:$0xff]
      %v279 = vld [vmem:[%s259 + $0x21] sm:$0xff]
      %v280 = vld [vmem:[%s259 + $0x31] sm:$0xff]
      %v281 = vld [vmem:[%s259 + $0x39] sm:$0xff]
      %v282 = vld [vmem:[%s259 + $0x49] sm:$0xff]
      %v283 = vld [vmem:[%s259 + $0x51] sm:$0xff]
      %v284 = vld [vmem:[%s259 + $0x61] sm:$0xff]
      %v285 = vld [vmem:[%s259 + $0x69] sm:$0xff]
      %v286 = vld [vmem:[%s259 + $0x79] sm:$0xff]
      %v287 = vld [vmem:[%s259 + $0x81] sm:$0xff]
      %v288 = vld [vmem:[%s259 + $0x91] sm:$0xff]
      %v289 = vld [vmem:[%s259 + $0x99] sm:$0xff]
      %v290 = vld [vmem:[%s259 + $0xa9] sm:$0xff]
      %v291 = vld [vmem:[%s259 + $0xb1] sm:$0xff]
      %v292 = vld [vmem:[%s259 + $0x2] sm:$0xff]
      %v293 = vld [vmem:[%s259 + $0xa] sm:$0xff]
      %v294 = vld [vmem:[%s259 + $0x1a] sm:$0xff]
      %v295 = vld [vmem:[%s259 + $0x22] sm:$0xff]
      %v296 = vld [vmem:[%s259 + $0x32] sm:$0xff]
      %v297 = vld [vmem:[%s259 + $0x3a] sm:$0xff]
      %v298 = vld [vmem:[%s259 + $0x4a] sm:$0xff]
      %v299 = vld [vmem:[%s259 + $0x52] sm:$0xff]
      %v300 = vld [vmem:[%s259 + $0x62] sm:$0xff]
      %v301 = vld [vmem:[%s259 + $0x6a] sm:$0xff]
      %v302 = vld [vmem:[%s259 + $0x7a] sm:$0xff]
      %v303 = vld [vmem:[%s259 + $0x82] sm:$0xff]
      %v304 = vld [vmem:[%s259 + $0x92] sm:$0xff]
      %v305 = vld [vmem:[%s259 + $0x9a] sm:$0xff]
      %v306 = vld [vmem:[%s259 + $0xaa] sm:$0xff]
      %v307 = vld [vmem:[%s259 + $0xb2] sm:$0xff]
      %s308 = sadd.s32 %s257, 1
      %s309 = smul.u32 %s308, 24
      %s310 = scalar_lea.vmem %s233, %s309
      %v311 = vld [vmem:[%s310] sm:$0xff]
      %v312 = vld [vmem:[%s310 + $0x8] sm:$0xff]
      %v313 = vld [vmem:[%s310 + $0x18] sm:$0xff]
      %v314 = vld [vmem:[%s310 + $0x20] sm:$0xff]
      %v315 = vld [vmem:[%s310 + $0x30] sm:$0xff]
      %v316 = vld [vmem:[%s310 + $0x38] sm:$0xff]
      %v317 = vld [vmem:[%s310 + $0x48] sm:$0xff]
      %v318 = vld [vmem:[%s310 + $0x50] sm:$0xff]
      %v319 = vld [vmem:[%s310 + $0x60] sm:$0xff]
      %v320 = vld [vmem:[%s310 + $0x68] sm:$0xff]
      %v321 = vld [vmem:[%s310 + $0x78] sm:$0xff]
      %v322 = vld [vmem:[%s310 + $0x80] sm:$0xff]
      %v323 = vld [vmem:[%s310 + $0x90] sm:$0xff]
      %v324 = vld [vmem:[%s310 + $0x98] sm:$0xff]
      %v325 = vld [vmem:[%s310 + $0xa8] sm:$0xff]
      %v326 = vld [vmem:[%s310 + $0xb0] sm:$0xff]
      %v327 = vld [vmem:[%s310 + $0x1] sm:$0xff]
      %v328 = vld [vmem:[%s310 + $0x9] sm:$0xff]
      %v329 = vld [vmem:[%s310 + $0x19] sm:$0xff]
      %v330 = vld [vmem:[%s310 + $0x21] sm:$0xff]
      %v331 = vld [vmem:[%s310 + $0x31] sm:$0xff]
      %v332 = vld [vmem:[%s310 + $0x39] sm:$0xff]
      %v333 = vld [vmem:[%s310 + $0x49] sm:$0xff]
      %v334 = vld [vmem:[%s310 + $0x51] sm:$0xff]
      %v335 = vld [vmem:[%s310 + $0x61] sm:$0xff]
      %v336 = vld [vmem:[%s310 + $0x69] sm:$0xff]
      %v337 = vld [vmem:[%s310 + $0x79] sm:$0xff]
      %v338 = vld [vmem:[%s310 + $0x81] sm:$0xff]
      %v339 = vld [vmem:[%s310 + $0x91] sm:$0xff]
      %v340 = vld [vmem:[%s310 + $0x99] sm:$0xff]
      %v341 = vld [vmem:[%s310 + $0xa9] sm:$0xff]
      %v342 = vld [vmem:[%s310 + $0xb1] sm:$0xff]
      %v343 = vld [vmem:[%s310 + $0x2] sm:$0xff]
      %v344 = vld [vmem:[%s310 + $0xa] sm:$0xff]
      %v345 = vld [vmem:[%s310 + $0x1a] sm:$0xff]
      %v346 = vld [vmem:[%s310 + $0x22] sm:$0xff]
      %v347 = vld [vmem:[%s310 + $0x32] sm:$0xff]
      %v348 = vld [vmem:[%s310 + $0x3a] sm:$0xff]
      %v349 = vld [vmem:[%s310 + $0x4a] sm:$0xff]
      %v350 = vld [vmem:[%s310 + $0x52] sm:$0xff]
      %v351 = vld [vmem:[%s310 + $0x62] sm:$0xff]
      %v352 = vld [vmem:[%s310 + $0x6a] sm:$0xff]
      %v353 = vld [vmem:[%s310 + $0x7a] sm:$0xff]
      %v354 = vld [vmem:[%s310 + $0x82] sm:$0xff]
      %v355 = vld [vmem:[%s310 + $0x92] sm:$0xff]
      %v356 = vld [vmem:[%s310 + $0x9a] sm:$0xff]
      %v357 = vld [vmem:[%s310 + $0xaa] sm:$0xff]
      %v358 = vld [vmem:[%s310 + $0xb2] sm:$0xff]
      %s359 = sadd.s32 %s257, 2
      %s360 = smul.u32 %s359, 24
      %s361 = scalar_lea.vmem %s233, %s360
      %v362 = vld [vmem:[%s361] sm:$0xff]
      %v363 = vld [vmem:[%s361 + $0x8] sm:$0xff]
      %v364 = vld [vmem:[%s361 + $0x18] sm:$0xff]
      %v365 = vld [vmem:[%s361 + $0x20] sm:$0xff]
      %v366 = vld [vmem:[%s361 + $0x30] sm:$0xff]
      %v367 = vld [vmem:[%s361 + $0x38] sm:$0xff]
      %v368 = vld [vmem:[%s361 + $0x48] sm:$0xff]
      %v369 = vld [vmem:[%s361 + $0x50] sm:$0xff]
      %v370 = vld [vmem:[%s361 + $0x60] sm:$0xff]
      %v371 = vld [vmem:[%s361 + $0x68] sm:$0xff]
      %v372 = vld [vmem:[%s361 + $0x78] sm:$0xff]
      %v373 = vld [vmem:[%s361 + $0x80] sm:$0xff]
      %v374 = vld [vmem:[%s361 + $0x90] sm:$0xff]
      %v375 = vld [vmem:[%s361 + $0x98] sm:$0xff]
      %v376 = vld [vmem:[%s361 + $0xa8] sm:$0xff]
      %v377 = vld [vmem:[%s361 + $0xb0] sm:$0xff]
      %v378 = vld [vmem:[%s361 + $0x1] sm:$0xff]
      %v379 = vld [vmem:[%s361 + $0x9] sm:$0xff]
      %v380 = vld [vmem:[%s361 + $0x19] sm:$0xff]
      %v381 = vld [vmem:[%s361 + $0x21] sm:$0xff]
      %v382 = vld [vmem:[%s361 + $0x31] sm:$0xff]
      %v383 = vld [vmem:[%s361 + $0x39] sm:$0xff]
      %v384 = vld [vmem:[%s361 + $0x49] sm:$0xff]
      %v385 = vld [vmem:[%s361 + $0x51] sm:$0xff]
      %v386 = vld [vmem:[%s361 + $0x61] sm:$0xff]
      %v387 = vld [vmem:[%s361 + $0x69] sm:$0xff]
      %v388 = vld [vmem:[%s361 + $0x79] sm:$0xff]
      %v389 = vld [vmem:[%s361 + $0x81] sm:$0xff]
      %v390 = vld [vmem:[%s361 + $0x91] sm:$0xff]
      %v391 = vld [vmem:[%s361 + $0x99] sm:$0xff]
      %v392 = vld [vmem:[%s361 + $0xa9] sm:$0xff]
      %v393 = vld [vmem:[%s361 + $0xb1] sm:$0xff]
      %v394 = vld [vmem:[%s361 + $0x2] sm:$0xff]
      %v395 = vld [vmem:[%s361 + $0xa] sm:$0xff]
      %v396 = vld [vmem:[%s361 + $0x1a] sm:$0xff]
      %v397 = vld [vmem:[%s361 + $0x22] sm:$0xff]
      %v398 = vld [vmem:[%s361 + $0x32] sm:$0xff]
      %v399 = vld [vmem:[%s361 + $0x3a] sm:$0xff]
      %v400 = vld [vmem:[%s361 + $0x4a] sm:$0xff]
      %v401 = vld [vmem:[%s361 + $0x52] sm:$0xff]
      %v402 = vld [vmem:[%s361 + $0x62] sm:$0xff]
      %v403 = vld [vmem:[%s361 + $0x6a] sm:$0xff]
      %v404 = vld [vmem:[%s361 + $0x7a] sm:$0xff]
      %v405 = vld [vmem:[%s361 + $0x82] sm:$0xff]
      %v406 = vld [vmem:[%s361 + $0x92] sm:$0xff]
      %v407 = vld [vmem:[%s361 + $0x9a] sm:$0xff]
      %v408 = vld [vmem:[%s361 + $0xaa] sm:$0xff]
      %v409 = vld [vmem:[%s361 + $0xb2] sm:$0xff]
      %426 = vrot.lane.b32.xlu0 %v276, 4
      %v427 = vpop.permute.xlu0 %426
      %428 = vrot.lane.b32.xlu0 %v277, 4
      %v429 = vpop.permute.xlu0 %428
      %430 = vrot.lane.b32.xlu0 %v278, 4
      %v431 = vpop.permute.xlu0 %430
      %432 = vrot.lane.b32.xlu0 %v279, 4
      %v433 = vpop.permute.xlu0 %432
      %434 = vrot.lane.b32.xlu0 %v280, 4
      %v435 = vpop.permute.xlu0 %434
      %436 = vrot.lane.b32.xlu0 %v281, 4
      %v437 = vpop.permute.xlu0 %436
      %438 = vrot.lane.b32.xlu0 %v282, 4
      %v439 = vpop.permute.xlu0 %438
      %440 = vrot.lane.b32.xlu0 %v283, 4
      %v441 = vpop.permute.xlu0 %440
      %442 = vrot.lane.b32.xlu0 %v284, 4
      %v443 = vpop.permute.xlu0 %442
      %444 = vrot.lane.b32.xlu0 %v285, 4
      %v445 = vpop.permute.xlu0 %444
      %446 = vrot.lane.b32.xlu0 %v286, 4
      %v447 = vpop.permute.xlu0 %446
      %448 = vrot.lane.b32.xlu0 %v287, 4
      %v449 = vpop.permute.xlu0 %448
      %450 = vrot.lane.b32.xlu0 %v288, 4
      %v451 = vpop.permute.xlu0 %450
      %452 = vrot.lane.b32.xlu0 %v289, 4
      %v453 = vpop.permute.xlu0 %452
      %454 = vrot.lane.b32.xlu0 %v290, 4
      %v455 = vpop.permute.xlu0 %454
      %456 = vrot.lane.b32.xlu0 %v291, 4
      %v457 = vpop.permute.xlu0 %456
      %490 = vrot.lane.b32.xlu0 %v292, 8
      %v491 = vpop.permute.xlu0 %490
      %492 = vrot.lane.b32.xlu0 %v293, 8
      %v493 = vpop.permute.xlu0 %492
      %494 = vrot.lane.b32.xlu0 %v294, 8
      %v495 = vpop.permute.xlu0 %494
      %496 = vrot.lane.b32.xlu0 %v295, 8
      %v497 = vpop.permute.xlu0 %496
      %498 = vrot.lane.b32.xlu0 %v296, 8
      %v499 = vpop.permute.xlu0 %498
      %500 = vrot.lane.b32.xlu0 %v297, 8
      %v501 = vpop.permute.xlu0 %500
      %502 = vrot.lane.b32.xlu0 %v298, 8
      %v503 = vpop.permute.xlu0 %502
      %504 = vrot.lane.b32.xlu0 %v299, 8
      %v505 = vpop.permute.xlu0 %504
      %506 = vrot.lane.b32.xlu0 %v300, 8
      %v507 = vpop.permute.xlu0 %506
      %508 = vrot.lane.b32.xlu0 %v301, 8
      %v509 = vpop.permute.xlu0 %508
      %510 = vrot.lane.b32.xlu0 %v302, 8
      %v511 = vpop.permute.xlu0 %510
      %512 = vrot.lane.b32.xlu0 %v303, 8
      %v513 = vpop.permute.xlu0 %512
      %514 = vrot.lane.b32.xlu0 %v304, 8
      %v515 = vpop.permute.xlu0 %514
      %516 = vrot.lane.b32.xlu0 %v305, 8
      %v517 = vpop.permute.xlu0 %516
      %518 = vrot.lane.b32.xlu0 %v306, 8
      %v519 = vpop.permute.xlu0 %518
      %520 = vrot.lane.b32.xlu0 %v307, 8
      %v521 = vpop.permute.xlu0 %520
      %554 = vrot.lane.b32.xlu0 %v311, 12
      %v555 = vpop.permute.xlu0 %554
      %556 = vrot.lane.b32.xlu0 %v312, 12
      %v557 = vpop.permute.xlu0 %556
      %558 = vrot.lane.b32.xlu0 %v313, 12
      %v559 = vpop.permute.xlu0 %558
      %560 = vrot.lane.b32.xlu0 %v314, 12
      %v561 = vpop.permute.xlu0 %560
      %562 = vrot.lane.b32.xlu0 %v315, 12
      %v563 = vpop.permute.xlu0 %562
      %564 = vrot.lane.b32.xlu0 %v316, 12
      %v565 = vpop.permute.xlu0 %564
      %566 = vrot.lane.b32.xlu0 %v317, 12
      %v567 = vpop.permute.xlu0 %566
      %568 = vrot.lane.b32.xlu0 %v318, 12
      %v569 = vpop.permute.xlu0 %568
      %570 = vrot.lane.b32.xlu0 %v319, 12
      %v571 = vpop.permute.xlu0 %570
      %572 = vrot.lane.b32.xlu0 %v320, 12
      %v573 = vpop.permute.xlu0 %572
      %574 = vrot.lane.b32.xlu0 %v321, 12
      %v575 = vpop.permute.xlu0 %574
      %576 = vrot.lane.b32.xlu0 %v322, 12
      %v577 = vpop.permute.xlu0 %576
      %578 = vrot.lane.b32.xlu0 %v323, 12
      %v579 = vpop.permute.xlu0 %578
      %580 = vrot.lane.b32.xlu0 %v324, 12
      %v581 = vpop.permute.xlu0 %580
      %582 = vrot.lane.b32.xlu0 %v325, 12
      %v583 = vpop.permute.xlu0 %582
      %584 = vrot.lane.b32.xlu0 %v326, 12
      %v585 = vpop.permute.xlu0 %584
      %618 = vrot.lane.b32.xlu0 %v327, 16
      %v619 = vpop.permute.xlu0 %618
      %620 = vrot.lane.b32.xlu0 %v328, 16
      %v621 = vpop.permute.xlu0 %620
      %622 = vrot.lane.b32.xlu0 %v329, 16
      %v623 = vpop.permute.xlu0 %622
      %624 = vrot.lane.b32.xlu0 %v330, 16
      %v625 = vpop.permute.xlu0 %624
      %626 = vrot.lane.b32.xlu0 %v331, 16
      %v627 = vpop.permute.xlu0 %626
      %628 = vrot.lane.b32.xlu0 %v332, 16
      %v629 = vpop.permute.xlu0 %628
      %630 = vrot.lane.b32.xlu0 %v333, 16
      %v631 = vpop.permute.xlu0 %630
      %632 = vrot.lane.b32.xlu0 %v334, 16
      %v633 = vpop.permute.xlu0 %632
      %634 = vrot.lane.b32.xlu0 %v335, 16
      %v635 = vpop.permute.xlu0 %634
      %636 = vrot.lane.b32.xlu0 %v336, 16
      %v637 = vpop.permute.xlu0 %636
      %638 = vrot.lane.b32.xlu0 %v337, 16
      %v639 = vpop.permute.xlu0 %638
      %640 = vrot.lane.b32.xlu0 %v338, 16
      %v641 = vpop.permute.xlu0 %640
      %642 = vrot.lane.b32.xlu0 %v339, 16
      %v643 = vpop.permute.xlu0 %642
      %644 = vrot.lane.b32.xlu0 %v340, 16
      %v645 = vpop.permute.xlu0 %644
      %646 = vrot.lane.b32.xlu0 %v341, 16
      %v647 = vpop.permute.xlu0 %646
      %648 = vrot.lane.b32.xlu0 %v342, 16
      %v649 = vpop.permute.xlu0 %648
      %682 = vrot.lane.b32.xlu0 %v343, 20
      %v683 = vpop.permute.xlu0 %682
      %684 = vrot.lane.b32.xlu0 %v344, 20
      %v685 = vpop.permute.xlu0 %684
      %686 = vrot.lane.b32.xlu0 %v345, 20
      %v687 = vpop.permute.xlu0 %686
      %688 = vrot.lane.b32.xlu0 %v346, 20
      %v689 = vpop.permute.xlu0 %688
      %690 = vrot.lane.b32.xlu0 %v347, 20
      %v691 = vpop.permute.xlu0 %690
      %692 = vrot.lane.b32.xlu0 %v348, 20
      %v693 = vpop.permute.xlu0 %692
      %694 = vrot.lane.b32.xlu0 %v349, 20
      %v695 = vpop.permute.xlu0 %694
      %696 = vrot.lane.b32.xlu0 %v350, 20
      %v697 = vpop.permute.xlu0 %696
      %698 = vrot.lane.b32.xlu0 %v351, 20
      %v699 = vpop.permute.xlu0 %698
      %700 = vrot.lane.b32.xlu0 %v352, 20
      %v701 = vpop.permute.xlu0 %700
      %702 = vrot.lane.b32.xlu0 %v353, 20
      %v703 = vpop.permute.xlu0 %702
      %704 = vrot.lane.b32.xlu0 %v354, 20
      %v705 = vpop.permute.xlu0 %704
      %706 = vrot.lane.b32.xlu0 %v355, 20
      %v707 = vpop.permute.xlu0 %706
      %708 = vrot.lane.b32.xlu0 %v356, 20
      %v709 = vpop.permute.xlu0 %708
      %710 = vrot.lane.b32.xlu0 %v357, 20
      %v711 = vpop.permute.xlu0 %710
      %712 = vrot.lane.b32.xlu0 %v358, 20
      %v713 = vpop.permute.xlu0 %712
      %746 = vrot.lane.b32.xlu0 %v362, 24
      %v747 = vpop.permute.xlu0 %746
      %748 = vrot.lane.b32.xlu0 %v363, 24
      %v749 = vpop.permute.xlu0 %748
      %750 = vrot.lane.b32.xlu0 %v364, 24
      %v751 = vpop.permute.xlu0 %750
      %752 = vrot.lane.b32.xlu0 %v365, 24
      %v753 = vpop.permute.xlu0 %752
      %754 = vrot.lane.b32.xlu0 %v366, 24
      %v755 = vpop.permute.xlu0 %754
      %756 = vrot.lane.b32.xlu0 %v367, 24
      %v757 = vpop.permute.xlu0 %756
      %758 = vrot.lane.b32.xlu0 %v368, 24
      %v759 = vpop.permute.xlu0 %758
      %760 = vrot.lane.b32.xlu0 %v369, 24
      %v761 = vpop.permute.xlu0 %760
      %762 = vrot.lane.b32.xlu0 %v370, 24
      %v763 = vpop.permute.xlu0 %762
      %764 = vrot.lane.b32.xlu0 %v371, 24
      %v765 = vpop.permute.xlu0 %764
      %766 = vrot.lane.b32.xlu0 %v372, 24
      %v767 = vpop.permute.xlu0 %766
      %768 = vrot.lane.b32.xlu0 %v373, 24
      %v769 = vpop.permute.xlu0 %768
      %770 = vrot.lane.b32.xlu0 %v374, 24
      %v771 = vpop.permute.xlu0 %770
      %772 = vrot.lane.b32.xlu0 %v375, 24
      %v773 = vpop.permute.xlu0 %772
      %774 = vrot.lane.b32.xlu0 %v376, 24
      %v775 = vpop.permute.xlu0 %774
      %776 = vrot.lane.b32.xlu0 %v377, 24
      %v777 = vpop.permute.xlu0 %776
      %810 = vrot.lane.b32.xlu0 %v378, 28
      %v811 = vpop.permute.xlu0 %810
      %812 = vrot.lane.b32.xlu0 %v379, 28
      %v813 = vpop.permute.xlu0 %812
      %814 = vrot.lane.b32.xlu0 %v380, 28
      %v815 = vpop.permute.xlu0 %814
      %816 = vrot.lane.b32.xlu0 %v381, 28
      %v817 = vpop.permute.xlu0 %816
      %818 = vrot.lane.b32.xlu0 %v382, 28
      %v819 = vpop.permute.xlu0 %818
      %820 = vrot.lane.b32.xlu0 %v383, 28
      %v821 = vpop.permute.xlu0 %820
      %822 = vrot.lane.b32.xlu0 %v384, 28
      %v823 = vpop.permute.xlu0 %822
      %824 = vrot.lane.b32.xlu0 %v385, 28
      %v825 = vpop.permute.xlu0 %824
      %826 = vrot.lane.b32.xlu0 %v386, 28
      %v827 = vpop.permute.xlu0 %826
      %828 = vrot.lane.b32.xlu0 %v387, 28
      %v829 = vpop.permute.xlu0 %828
      %830 = vrot.lane.b32.xlu0 %v388, 28
      %v831 = vpop.permute.xlu0 %830
      %832 = vrot.lane.b32.xlu0 %v389, 28
      %v833 = vpop.permute.xlu0 %832
      %834 = vrot.lane.b32.xlu0 %v390, 28
      %v835 = vpop.permute.xlu0 %834
      %836 = vrot.lane.b32.xlu0 %v391, 28
      %v837 = vpop.permute.xlu0 %836
      %838 = vrot.lane.b32.xlu0 %v392, 28
      %v839 = vpop.permute.xlu0 %838
      %840 = vrot.lane.b32.xlu0 %v393, 28
      %v841 = vpop.permute.xlu0 %840
      %874 = vrot.lane.b32.xlu0 %v394, 32
      %v875 = vpop.permute.xlu0 %874
      %876 = vrot.lane.b32.xlu0 %v395, 32
      %v877 = vpop.permute.xlu0 %876
      %878 = vrot.lane.b32.xlu0 %v396, 32
      %v879 = vpop.permute.xlu0 %878
      %880 = vrot.lane.b32.xlu0 %v397, 32
      %v881 = vpop.permute.xlu0 %880
      %882 = vrot.lane.b32.xlu0 %v398, 32
      %v883 = vpop.permute.xlu0 %882
      %884 = vrot.lane.b32.xlu0 %v399, 32
      %v885 = vpop.permute.xlu0 %884
      %886 = vrot.lane.b32.xlu0 %v400, 32
      %v887 = vpop.permute.xlu0 %886
      %888 = vrot.lane.b32.xlu0 %v401, 32
      %v889 = vpop.permute.xlu0 %888
      %890 = vrot.lane.b32.xlu0 %v402, 32
      %v891 = vpop.permute.xlu0 %890
      %892 = vrot.lane.b32.xlu0 %v403, 32
      %v893 = vpop.permute.xlu0 %892
      %894 = vrot.lane.b32.xlu0 %v404, 32
      %v895 = vpop.permute.xlu0 %894
      %896 = vrot.lane.b32.xlu0 %v405, 32
      %v897 = vpop.permute.xlu0 %896
      %898 = vrot.lane.b32.xlu0 %v406, 32
      %v899 = vpop.permute.xlu0 %898
      %900 = vrot.lane.b32.xlu0 %v407, 32
      %v901 = vpop.permute.xlu0 %900
      %902 = vrot.lane.b32.xlu0 %v408, 32
      %v903 = vpop.permute.xlu0 %902
      %904 = vrot.lane.b32.xlu0 %v409, 32
      %v905 = vpop.permute.xlu0 %904
      %vm922 = vcmask 31744
      %v923 = vsel %vm922, %v260, %v427
      %v924 = vsel %vm922, %v261, %v429
      %v925 = vsel %vm922, %v262, %v431
      %v926 = vsel %vm922, %v263, %v433
      %v927 = vsel %vm922, %v264, %v435
      %v928 = vsel %vm922, %v265, %v437
      %v929 = vsel %vm922, %v266, %v439
      %v930 = vsel %vm922, %v267, %v441
      %v931 = vsel %vm922, %v268, %v443
      %v932 = vsel %vm922, %v269, %v445
      %v933 = vsel %vm922, %v270, %v447
      %v934 = vsel %vm922, %v271, %v449
      %v935 = vsel %vm922, %v272, %v451
      %v936 = vsel %vm922, %v273, %v453
      %v937 = vsel %vm922, %v274, %v455
      %v938 = vsel %vm922, %v275, %v457
      %vm939 = vcmask 64512
      %v940 = vsel %vm939, %v923, %v491
      %v941 = vsel %vm939, %v924, %v493
      %v942 = vsel %vm939, %v925, %v495
      %v943 = vsel %vm939, %v926, %v497
      %v944 = vsel %vm939, %v927, %v499
      %v945 = vsel %vm939, %v928, %v501
      %v946 = vsel %vm939, %v929, %v503
      %v947 = vsel %vm939, %v930, %v505
      %v948 = vsel %vm939, %v931, %v507
      %v949 = vsel %vm939, %v932, %v509
      %v950 = vsel %vm939, %v933, %v511
      %v951 = vsel %vm939, %v934, %v513
      %v952 = vsel %vm939, %v935, %v515
      %v953 = vsel %vm939, %v936, %v517
      %v954 = vsel %vm939, %v937, %v519
      %v955 = vsel %vm939, %v938, %v521
      %vm956 = vcmask 97280
      %v957 = vsel %vm956, %v940, %v555
      %v958 = vsel %vm956, %v941, %v557
      %v959 = vsel %vm956, %v942, %v559
      %v960 = vsel %vm956, %v943, %v561
      %v961 = vsel %vm956, %v944, %v563
      %v962 = vsel %vm956, %v945, %v565
      %v963 = vsel %vm956, %v946, %v567
      %v964 = vsel %vm956, %v947, %v569
      %v965 = vsel %vm956, %v948, %v571
      %v966 = vsel %vm956, %v949, %v573
      %v967 = vsel %vm956, %v950, %v575
      %v968 = vsel %vm956, %v951, %v577
      %v969 = vsel %vm956, %v952, %v579
      %v970 = vsel %vm956, %v953, %v581
      %v971 = vsel %vm956, %v954, %v583
      %v972 = vsel %vm956, %v955, %v585
      %vm973 = vcmask 130048
      %v974 = vsel %vm973, %v957, %v619
      %v975 = vsel %vm973, %v958, %v621
      %v976 = vsel %vm973, %v959, %v623
      %v977 = vsel %vm973, %v960, %v625
      %v978 = vsel %vm973, %v961, %v627
      %v979 = vsel %vm973, %v962, %v629
      %v980 = vsel %vm973, %v963, %v631
      %v981 = vsel %vm973, %v964, %v633
      %v982 = vsel %vm973, %v965, %v635
      %v983 = vsel %vm973, %v966, %v637
      %v984 = vsel %vm973, %v967, %v639
      %v985 = vsel %vm973, %v968, %v641
      %v986 = vsel %vm973, %v969, %v643
      %v987 = vsel %vm973, %v970, %v645
      %v988 = vsel %vm973, %v971, %v647
      %v989 = vsel %vm973, %v972, %v649
      %vm990 = vcmask 162816
      %v991 = vsel %vm990, %v974, %v683
      %v992 = vsel %vm990, %v975, %v685
      %v993 = vsel %vm990, %v976, %v687
      %v994 = vsel %vm990, %v977, %v689
      %v995 = vsel %vm990, %v978, %v691
      %v996 = vsel %vm990, %v979, %v693
      %v997 = vsel %vm990, %v980, %v695
      %v998 = vsel %vm990, %v981, %v697
      %v999 = vsel %vm990, %v982, %v699
      %v1000 = vsel %vm990, %v983, %v701
      %v1001 = vsel %vm990, %v984, %v703
      %v1002 = vsel %vm990, %v985, %v705
      %v1003 = vsel %vm990, %v986, %v707
      %v1004 = vsel %vm990, %v987, %v709
      %v1005 = vsel %vm990, %v988, %v711
      %v1006 = vsel %vm990, %v989, %v713
      %vm1007 = vcmask 195584
      %v1008 = vsel %vm1007, %v991, %v747
      %v1009 = vsel %vm1007, %v992, %v749
      %v1010 = vsel %vm1007, %v993, %v751
      %v1011 = vsel %vm1007, %v994, %v753
      %v1012 = vsel %vm1007, %v995, %v755
      %v1013 = vsel %vm1007, %v996, %v757
      %v1014 = vsel %vm1007, %v997, %v759
      %v1015 = vsel %vm1007, %v998, %v761
      %v1016 = vsel %vm1007, %v999, %v763
      %v1017 = vsel %vm1007, %v1000, %v765
      %v1018 = vsel %vm1007, %v1001, %v767
      %v1019 = vsel %vm1007, %v1002, %v769
      %v1020 = vsel %vm1007, %v1003, %v771
      %v1021 = vsel %vm1007, %v1004, %v773
      %v1022 = vsel %vm1007, %v1005, %v775
      %v1023 = vsel %vm1007, %v1006, %v777
      %vm1024 = vcmask 228352
      %v1025 = vsel %vm1024, %v1008, %v811
      %v1026 = vsel %vm1024, %v1009, %v813
      %v1027 = vsel %vm1024, %v1010, %v815
      %v1028 = vsel %vm1024, %v1011, %v817
      %v1029 = vsel %vm1024, %v1012, %v819
      %v1030 = vsel %vm1024, %v1013, %v821
      %v1031 = vsel %vm1024, %v1014, %v823
      %v1032 = vsel %vm1024, %v1015, %v825
      %v1033 = vsel %vm1024, %v1016, %v827
      %v1034 = vsel %vm1024, %v1017, %v829
      %v1035 = vsel %vm1024, %v1018, %v831
      %v1036 = vsel %vm1024, %v1019, %v833
      %v1037 = vsel %vm1024, %v1020, %v835
      %v1038 = vsel %vm1024, %v1021, %v837
      %v1039 = vsel %vm1024, %v1022, %v839
      %v1040 = vsel %vm1024, %v1023, %v841
      %vm1041 = vcmask 261120
      %v1042 = vsel %vm1041, %v1025, %v875
      %v1043 = vsel %vm1041, %v1026, %v877
      %v1044 = vsel %vm1041, %v1027, %v879
      %v1045 = vsel %vm1041, %v1028, %v881
      %v1046 = vsel %vm1041, %v1029, %v883
      %v1047 = vsel %vm1041, %v1030, %v885
      %v1048 = vsel %vm1041, %v1031, %v887
      %v1049 = vsel %vm1041, %v1032, %v889
      %v1050 = vsel %vm1041, %v1033, %v891
      %v1051 = vsel %vm1041, %v1034, %v893
      %v1052 = vsel %vm1041, %v1035, %v895
      %v1053 = vsel %vm1041, %v1036, %v897
      %v1054 = vsel %vm1041, %v1037, %v899
      %v1055 = vsel %vm1041, %v1038, %v901
      %v1056 = vsel %vm1041, %v1039, %v903
      %v1057 = vsel %vm1041, %v1040, %v905
      %v1058 = vld [vmem:[%s1] sm:$0xff]
      %v1059 = vld [vmem:[%s1 + $0x8] sm:$0xff]
      %v1060 = vld [vmem:[%s1 + $0x10] sm:$0xff]
      %v1061 = vld [vmem:[%s1 + $0x18] sm:$0xff]
      %v1062 = vld [vmem:[%s1 + $0x20] sm:$0xf]
      %vm1063 = vcmask 293888
      %v1065 = vsel %vm1063, %v1042, 0
      %v1068 = vsel %vm1063, %v1043, 0
      %v1071 = vsel %vm1063, %v1044, 0
      %v1074 = vsel %vm1063, %v1045, 0
      %v1077 = vsel %vm1063, %v1046, 0
      %v1080 = vsel %vm1063, %v1047, 0
      %v1083 = vsel %vm1063, %v1048, 0
      %v1086 = vsel %vm1063, %v1049, 0
      %v1089 = vsel %vm1063, %v1050, 0
      %v1092 = vsel %vm1063, %v1051, 0
      %v1095 = vsel %vm1063, %v1052, 0
      %v1098 = vsel %vm1063, %v1053, 0
      %v1101 = vsel %vm1063, %v1054, 0
      %v1104 = vsel %vm1063, %v1055, 0
      %v1107 = vsel %vm1063, %v1056, 0
      %v1110 = vsel %vm1063, %v1057, 0
      %vm1112 = vcmask 1043456
      %v1114 = vsel %vm1112, %v1062, 0
      %1116 = vmatprep.subr.mxu0 0.0
      %1117 = vmatpush1.msra.mxu0 %v1058
      %1118 = vmatprep.subr.mxu0 0.0
      %1119 = vmatpush1.msra.mxu0 %v1059
      %1120 = vmatprep.subr.mxu0 0.0
      %1121 = vmatpush1.msra.mxu0 %v1060
      %1122 = vmatprep.subr.mxu0 0.0
      %1123 = vmatpush1.msra.mxu0 %v1061
      %1124 = vmatprep.subr.mxu0 0.0
      %1125 = vmatpush1.msra.mxu0 %v1114
      %1126 = vmatprep.subr.mxu0 0.0
      %1127 = vmatpush1.msra.mxu0 0.0
      %1128 = vmatprep.subr.mxu0 0.0
      %1129 = vmatpush1.msra.mxu0 0.0
      %1130 = vmatprep.subr.mxu0 0.0
      %1131 = vmatpush1.msra.mxu0 0.0
      %1132 = vmatprep.subr.mxu0 0.0
      %1133 = vmatpush1.msra.mxu0 0.0
      %1134 = vmatprep.subr.mxu0 0.0
      %1135 = vmatpush1.msra.mxu0 0.0
      %1136 = vmatprep.subr.mxu0 0.0
      %1137 = vmatpush1.msra.mxu0 0.0
      %1138 = vmatprep.subr.mxu0 0.0
      %1139 = vmatpush1.msra.mxu0 0.0
      %1140 = vmatprep.subr.mxu0 0.0
      %1141 = vmatpush1.msra.mxu0 0.0
      %1142 = vmatprep.subr.mxu0 0.0
      %1143 = vmatpush1.msra.mxu0 0.0
      %1144 = vmatprep.subr.mxu0 0.0
      %1145 = vmatpush1.msra.mxu0 0.0
      %1146 = vmatprep.subr.mxu0 0.0
      %1147 = vmatpush1.msra.mxu0 0.0
      %1148 = vmatprep.subr.mxu0 0.0
      %1149 = vmatpush1.msra.mxu0 0.0
      %1150 = vmatprep.subr.mxu0 0.0
      %1151 = vmatpush1.msra.mxu0 0.0
      %1152 = vmatprep.subr.mxu0 0.0
      %1153 = vmatpush1.msra.mxu0 0.0
      %1154 = vmatprep.subr.mxu0 0.0
      %1155 = vmatpush1.msra.mxu0 0.0
      %1156 = vmatprep.subr.mxu0 0.0
      %1157 = vmatpush1.msra.mxu0 0.0
      %1158 = vmatprep.subr.mxu0 0.0
      %1159 = vmatpush1.msra.mxu0 0.0
      %1160 = vmatprep.subr.mxu0 0.0
      %1161 = vmatpush1.msra.mxu0 0.0
      %1162 = vmatprep.subr.mxu0 0.0
      %1163 = vmatpush1.msra.mxu0 0.0
      %1164 = vmatprep.subr.mxu0 0.0
      %1165 = vmatpush1.msra.mxu0 0.0
      %1166 = vmatprep.subr.mxu0 0.0
      %1167 = vmatpush1.msra.mxu0 0.0
      %1168 = vmatprep.subr.mxu0 0.0
      %1169 = vmatpush1.msra.mxu0 0.0
      %1170 = vmatprep.subr.mxu0 0.0
      %1171 = vmatpush1.msra.mxu0 0.0
      %1172 = vmatprep.subr.mxu0 0.0
      %1173 = vmatpush1.msra.mxu0 0.0
      %1174 = vmatprep.subr.mxu0 0.0
      %1175 = vmatpush1.msra.mxu0 0.0
      %1176 = vmatprep.subr.mxu0 0.0
      %1177 = vmatpush1.msra.mxu0 0.0
      %1178 = vmatprep.subr.mxu0 0.0
      %1179 = vmatpush1.msra.mxu0 0.0
      %1180 = vmatprep.mubr.f32.mxu0 0.0
      %1181 = vmatmul.mubr.f32.gmra.mrb[0].mxu0 %v1065
      %v1182 = vpop.f32.mrb[0].mxu0
      %v1183 = vadd.f32 0.0, %v1182
      %v1184 = vpop.f32.mrb[0].mxu0
      %1185 = vmatprep.mubr.f32.mxu0 0.0
      %1186 = vmatmul.mubr.f32.gmra.mrb[0].mxu0 %v1068
      %v1187 = vpop.f32.mrb[0].mxu0
      %v1188 = vadd.f32 0.0, %v1187
      %v1189 = vpop.f32.mrb[0].mxu0
      %1190 = vmatprep.mubr.f32.mxu0 0.0
      %1191 = vmatmul.mubr.f32.gmra.mrb[0].mxu0 %v1071
      %v1192 = vpop.f32.mrb[0].mxu0
      %v1193 = vadd.f32 0.0, %v1192
      %v1194 = vpop.f32.mrb[0].mxu0
      %1195 = vmatprep.mubr.f32.mxu0 0.0
      %1196 = vmatmul.mubr.f32.gmra.mrb[0].mxu0 %v1074
      %v1197 = vpop.f32.mrb[0].mxu0
      %v1198 = vadd.f32 0.0, %v1197
      %v1199 = vpop.f32.mrb[0].mxu0
      %1200 = vmatprep.mubr.f32.mxu0 0.0
      %1201 = vmatmul.mubr.f32.gmra.mrb[0].mxu0 %v1077
      %v1202 = vpop.f32.mrb[0].mxu0
      %v1203 = vadd.f32 0.0, %v1202
      %v1204 = vpop.f32.mrb[0].mxu0
      %1205 = vmatprep.mubr.f32.mxu0 0.0
      %1206 = vmatmul.mubr.f32.gmra.mrb[0].mxu0 %v1080
      %v1207 = vpop.f32.mrb[0].mxu0
      %v1208 = vadd.f32 0.0, %v1207
      %v1209 = vpop.f32.mrb[0].mxu0
      %1210 = vmatprep.mubr.f32.mxu0 0.0
      %1211 = vmatmul.mubr.f32.gmra.mrb[0].mxu0 %v1083
      %v1212 = vpop.f32.mrb[0].mxu0
      %v1213 = vadd.f32 0.0, %v1212
      %v1214 = vpop.f32.mrb[0].mxu0
      %1215 = vmatprep.mubr.f32.mxu0 0.0
      %1216 = vmatmul.mubr.f32.gmra.mrb[0].mxu0 %v1086
      %v1217 = vpop.f32.mrb[0].mxu0
      %v1218 = vadd.f32 0.0, %v1217
      %v1219 = vpop.f32.mrb[0].mxu0
      %1220 = vmatprep.mubr.f32.mxu0 0.0
      %1221 = vmatmul.mubr.f32.gmra.mrb[0].mxu0 %v1089
      %v1222 = vpop.f32.mrb[0].mxu0
      %v1223 = vadd.f32 0.0, %v1222
      %v1224 = vpop.f32.mrb[0].mxu0
      %1225 = vmatprep.mubr.f32.mxu0 0.0
      %1226 = vmatmul.mubr.f32.gmra.mrb[0].mxu0 %v1092
      %v1227 = vpop.f32.mrb[0].mxu0
      %v1228 = vadd.f32 0.0, %v1227
      %v1229 = vpop.f32.mrb[0].mxu0
      %1230 = vmatprep.mubr.f32.mxu0 0.0
      %1231 = vmatmul.mubr.f32.gmra.mrb[0].mxu0 %v1095
      %v1232 = vpop.f32.mrb[0].mxu0
      %v1233 = vadd.f32 0.0, %v1232
      %v1234 = vpop.f32.mrb[0].mxu0
      %1235 = vmatprep.mubr.f32.mxu0 0.0
      %1236 = vmatmul.mubr.f32.gmra.mrb[0].mxu0 %v1098
      %v1237 = vpop.f32.mrb[0].mxu0
      %v1238 = vadd.f32 0.0, %v1237
      %v1239 = vpop.f32.mrb[0].mxu0
      %1240 = vmatprep.mubr.f32.mxu0 0.0
      %1241 = vmatmul.mubr.f32.gmra.mrb[0].mxu0 %v1101
      %v1242 = vpop.f32.mrb[0].mxu0
      %v1243 = vadd.f32 0.0, %v1242
      %v1244 = vpop.f32.mrb[0].mxu0
      %1245 = vmatprep.mubr.f32.mxu0 0.0
      %1246 = vmatmul.mubr.f32.gmra.mrb[0].mxu0 %v1104
      %v1247 = vpop.f32.mrb[0].mxu0
      %v1248 = vadd.f32 0.0, %v1247
      %v1249 = vpop.f32.mrb[0].mxu0
      %1250 = vmatprep.mubr.f32.mxu0 0.0
      %1251 = vmatmul.mubr.f32.gmra.mrb[0].mxu0 %v1107
      %v1252 = vpop.f32.mrb[0].mxu0
      %v1253 = vadd.f32 0.0, %v1252
      %v1254 = vpop.f32.mrb[0].mxu0
      %1255 = vmatprep.mubr.f32.mxu0 0.0
      %1256 = vmatmul.mubr.f32.gmra.mrb[0].mxu0 %v1110
      %v1257 = vpop.f32.mrb[0].mxu0
      %v1258 = vadd.f32 0.0, %v1257
      %v1259 = vpop.f32.mrb[0].mxu0
      %1260 = vdwg.mxu0
      %v1261 = vsel %vm939, %v1183, 0.0
      %v1262 = vsel %vm939, %v1188, 0.0
      %v1263 = vadd.f32 %v1261, %v1262
      %v1264 = vsel %vm939, %v1193, 0.0
      %v1265 = vadd.f32 %v1263, %v1264
      %v1266 = vsel %vm939, %v1198, 0.0
      %v1267 = vadd.f32 %v1265, %v1266
      %v1268 = vsel %vm939, %v1203, 0.0
      %v1269 = vadd.f32 %v1267, %v1268
      %v1270 = vsel %vm939, %v1208, 0.0
      %v1271 = vadd.f32 %v1269, %v1270
      %v1272 = vsel %vm939, %v1213, 0.0
      %v1273 = vadd.f32 %v1271, %v1272
      %v1274 = vsel %vm939, %v1218, 0.0
      %v1275 = vadd.f32 %v1273, %v1274
      %v1276 = vsel %vm939, %v1223, 0.0
      %v1277 = vadd.f32 %v1275, %v1276
      %v1278 = vsel %vm939, %v1228, 0.0
      %v1279 = vadd.f32 %v1277, %v1278
      %v1280 = vsel %vm939, %v1233, 0.0
      %v1281 = vadd.f32 %v1279, %v1280
      %v1282 = vsel %vm939, %v1238, 0.0
      %v1283 = vadd.f32 %v1281, %v1282
      %v1284 = vsel %vm939, %v1243, 0.0
      %v1285 = vadd.f32 %v1283, %v1284
      %v1286 = vsel %vm939, %v1248, 0.0
      %v1287 = vadd.f32 %v1285, %v1286
      %v1288 = vsel %vm939, %v1253, 0.0
      %v1289 = vadd.f32 %v1287, %v1288
      %v1290 = vsel %vm939, %v1258, 0.0
      %v1291 = vadd.f32 %v1289, %v1290
      %v1292 = vrot.slane %v1291, 4
      %v1293 = vadd.f32 %v1291, %v1292
      %v1294 = vrot.slane %v1293, 2
      %v1295 = vadd.f32 %v1293, %v1294
      %v1296 = vrot.slane %v1295, 1
      %v1297 = vadd.f32 %v1295, %v1296
      %vm1298 = vcmask 57344
      %1299 = vst.msk [vmem:[%s247] sm:$0x1] %vm1298, %v1297
      %v1300 = vmul.f32 %v1183, %v1183
      %v1301 = vmul.f32 %v1188, %v1188
      %v1302 = vmul.f32 %v1193, %v1193
      %v1303 = vmul.f32 %v1198, %v1198
      %v1304 = vmul.f32 %v1203, %v1203
      %v1305 = vmul.f32 %v1208, %v1208
      %v1306 = vmul.f32 %v1213, %v1213
      %v1307 = vmul.f32 %v1218, %v1218
      %v1308 = vmul.f32 %v1223, %v1223
      %v1309 = vmul.f32 %v1228, %v1228
      %v1310 = vmul.f32 %v1233, %v1233
      %v1311 = vmul.f32 %v1238, %v1238
      %v1312 = vmul.f32 %v1243, %v1243
      %v1313 = vmul.f32 %v1248, %v1248
      %v1314 = vmul.f32 %v1253, %v1253
      %v1315 = vmul.f32 %v1258, %v1258
      %v1316 = vsel %vm939, %v1300, 0.0
      %v1317 = vsel %vm939, %v1301, 0.0
      %v1318 = vadd.f32 %v1316, %v1317
      %v1319 = vsel %vm939, %v1302, 0.0
      %v1320 = vadd.f32 %v1318, %v1319
      %v1321 = vsel %vm939, %v1303, 0.0
      %v1322 = vadd.f32 %v1320, %v1321
      %v1323 = vsel %vm939, %v1304, 0.0
      %v1324 = vadd.f32 %v1322, %v1323
      %v1325 = vsel %vm939, %v1305, 0.0
      %v1326 = vadd.f32 %v1324, %v1325
      %v1327 = vsel %vm939, %v1306, 0.0
      %v1328 = vadd.f32 %v1326, %v1327
      %v1329 = vsel %vm939, %v1307, 0.0
      %v1330 = vadd.f32 %v1328, %v1329
      %v1331 = vsel %vm939, %v1308, 0.0
      %v1332 = vadd.f32 %v1330, %v1331
      %v1333 = vsel %vm939, %v1309, 0.0
      %v1334 = vadd.f32 %v1332, %v1333
      %v1335 = vsel %vm939, %v1310, 0.0
      %v1336 = vadd.f32 %v1334, %v1335
      %v1337 = vsel %vm939, %v1311, 0.0
      %v1338 = vadd.f32 %v1336, %v1337
      %v1339 = vsel %vm939, %v1312, 0.0
      %v1340 = vadd.f32 %v1338, %v1339
      %v1341 = vsel %vm939, %v1313, 0.0
      %v1342 = vadd.f32 %v1340, %v1341
      %v1343 = vsel %vm939, %v1314, 0.0
      %v1344 = vadd.f32 %v1342, %v1343
      %v1345 = vsel %vm939, %v1315, 0.0
      %v1346 = vadd.f32 %v1344, %v1345
      %v1347 = vrot.slane %v1346, 4
      %v1348 = vadd.f32 %v1346, %v1347
      %v1349 = vrot.slane %v1348, 2
      %v1350 = vadd.f32 %v1348, %v1349
      %v1351 = vrot.slane %v1350, 1
      %v1352 = vadd.f32 %v1350, %v1351
      %1353 = vst.msk [vmem:[%s254] sm:$0x1] %vm1298, %v1352
      %1354 = vst.msk [vmem:[%s240] sm:$0xff] %vm939, %v1183
      %1355 = vst.msk [vmem:[%s240 + $0x8] sm:$0xff] %vm939, %v1188
      %1356 = vst.msk [vmem:[%s240 + $0x10] sm:$0xff] %vm939, %v1193
      %1357 = vst.msk [vmem:[%s240 + $0x18] sm:$0xff] %vm939, %v1198
      %1358 = vst.msk [vmem:[%s240 + $0x20] sm:$0xff] %vm939, %v1203
      %1359 = vst.msk [vmem:[%s240 + $0x28] sm:$0xff] %vm939, %v1208
      %1360 = vst.msk [vmem:[%s240 + $0x30] sm:$0xff] %vm939, %v1213
      %1361 = vst.msk [vmem:[%s240 + $0x38] sm:$0xff] %vm939, %v1218
      %1362 = vst.msk [vmem:[%s240 + $0x40] sm:$0xff] %vm939, %v1223
      %1363 = vst.msk [vmem:[%s240 + $0x48] sm:$0xff] %vm939, %v1228
      %1364 = vst.msk [vmem:[%s240 + $0x50] sm:$0xff] %vm939, %v1233
      %1365 = vst.msk [vmem:[%s240 + $0x58] sm:$0xff] %vm939, %v1238
      %1366 = vst.msk [vmem:[%s240 + $0x60] sm:$0xff] %vm939, %v1243
      %1367 = vst.msk [vmem:[%s240 + $0x68] sm:$0xff] %vm939, %v1248
      %1368 = vst.msk [vmem:[%s240 + $0x70] sm:$0xff] %vm939, %v1253
      %1369 = vst.msk [vmem:[%s240 + $0x78] sm:$0xff] %vm939, %v1258
      %s1370 = smul.u32 %s20, 2
      %s1371 = sadd.s32 %s1370, %s21
      %p1372 = scmp.lt.s32.totalorder %s1371, 3
      %s1373 = scalar_select %p1372, %s1371, 3
      %s1374 = smul.addr %s1373, 16
      %s1375 = smul.addr %s1374, 8
      %s1376 = scalar_lea.vmem %s2, %s1375
      %s1377 = smul.u32 %s20, 2
      %s1378 = sadd.s32 %s1377, %s21
      %p1379 = scmp.lt.s32.totalorder %s1378, 3
      %s1380 = scalar_select %p1379, %s1378, 3
      %s1381 = scalar_lea.vmem %s3, %s1380
      %s1382 = smul.u32 %s20, 2
      %s1383 = sadd.s32 %s1382, %s21
      %p1384 = scmp.lt.s32.totalorder %s1383, 3
      %s1385 = scalar_select %p1384, %s1383, 3
      %s1386 = scalar_lea.vmem %s4, %s1385
      // Predicated region
      $region29: #{conv_bn_relu6.2} parent=27 // pred_check
        %p1387 = pneg %p97
      $region30: #{conv_bn_relu6.2} parent=27 // pred_check_branch
        %1389 = sbr.rel (%p1387) target = $region32
      $region31: #{conv_bn_relu6.2} parent=27 // pred_region
        %s1390 = smul.u32 %s20, 2
        %s1391 = sadd.s32 %s1390, %s21
      $region32: #{conv_bn_relu6.2} parent=27 // pred_fallthru
        _
      // Predicated region
      $region33: #{conv_bn_relu6.2} parent=27 // pred_check
        %p1392 = pneg %p127
      $region34: #{conv_bn_relu6.2} parent=27 // pred_check_branch
        %1394 = sbr.rel (%p1392) target = $region36
      $region35: #{conv_bn_relu6.2} parent=27 // pred_region
        %s1395 = smul.u32 %s20, 2
        %s1396 = sadd.s32 %s1395, %s21
      $region36: #{conv_bn_relu6.2} parent=27 // pred_fallthru
        _
      // Predicated region
      $region37: #{conv_bn_relu6.2} parent=27 // pred_check
        %p1397 = pneg %p157
      $region38: #{conv_bn_relu6.2} parent=27 // pred_check_branch
        %1399 = sbr.rel (%p1397) target = $region40
      $region39: #{conv_bn_relu6.2} parent=27 // pred_region
        %s1400 = smul.u32 %s20, 2
        %s1401 = sadd.s32 %s1400, %s21
      $region40: #{conv_bn_relu6.2} parent=27 // pred_fallthru
        _
    $region28: #{conv_bn_relu6.2} parent=5 // pred_fallthru
      _
    %p1402 = scmp.le.s32.totalorder 2, %s11
    // Predicated region
    $region41: #{conv_bn_relu6.2} parent=5 // pred_check
      %p1403 = pneg %p1402
    $region42: #{conv_bn_relu6.2} parent=5 // pred_check_branch
      %1405 = sbr.rel (%p1403) target = $region44
    $region43: #{conv_bn_relu6.2} parent=5 // pred_region
      %s1406 = ssub.s32 %s11, 2
      // Predicated region
      $region45: #{conv_bn_relu6.2} parent=43 // pred_check
        %p1407 = pneg %p103
      $region46: #{conv_bn_relu6.2} parent=43 // pred_check_branch
        %1409 = sbr.rel (%p1407) target = $region48
      $region47: #{conv_bn_relu6.2} parent=43 // pred_region
        %s1410 = smul.u32 %s22, 2
        %s1411 = sadd.s32 %s1410, %s23
        %p1412 = scmp.lt.s32.totalorder %s1411, 3
        %s1413 = scalar_select %p1412, %s1411, 3
        %s1414 = smul.addr %s1413, 16
        %s1415 = smul.addr %s1414, 8
        %s1416 = scalar_lea.vmem %s2, %s1415
      $region48: #{conv_bn_relu6.2} parent=43 // pred_fallthru
        _
      // Predicated region
      $region49: #{conv_bn_relu6.2} parent=43 // pred_check
        %p1417 = pneg %p133
      $region50: #{conv_bn_relu6.2} parent=43 // pred_check_branch
        %1419 = sbr.rel (%p1417) target = $region52
      $region51: #{conv_bn_relu6.2} parent=43 // pred_region
        %s1420 = smul.u32 %s22, 2
        %s1421 = sadd.s32 %s1420, %s23
        %p1422 = scmp.lt.s32.totalorder %s1421, 3
        %s1423 = scalar_select %p1422, %s1421, 3
        %s1424 = scalar_lea.vmem %s3, %s1423
      $region52: #{conv_bn_relu6.2} parent=43 // pred_fallthru
        _
      // Predicated region
      $region53: #{conv_bn_relu6.2} parent=43 // pred_check
        %p1425 = pneg %p163
      $region54: #{conv_bn_relu6.2} parent=43 // pred_check_branch
        %1427 = sbr.rel (%p1425) target = $region56
      $region55: #{conv_bn_relu6.2} parent=43 // pred_region
        %s1428 = smul.u32 %s22, 2
        %s1429 = sadd.s32 %s1428, %s23
        %p1430 = scmp.lt.s32.totalorder %s1429, 3
        %s1431 = scalar_select %p1430, %s1429, 3
        %s1432 = scalar_lea.vmem %s4, %s1431
      $region56: #{conv_bn_relu6.2} parent=43 // pred_fallthru
        _
    $region44: #{conv_bn_relu6.2} parent=5 // pred_fallthru
      _
  $region6: #{conv_bn_relu6.2} parent=0 // loop_footer
    %s15 = sadd.s32 1, %s11
  $region7: #{conv_bn_relu6.2} parent=0 // loop_footer_branch
    %10 = sbr.rel target = $region3
  $region8: #{conv_bn_relu6.2} parent=0 // loop_exit
    _

// kernel: conv_bn_relu6.3
$region0: #{conv_bn_relu6.3}
  #allocation0 [shape = 'u32[]', space=smem, size = 0x4, offset = 0x4, fixed_abs, tag = 'smem constant byte address 0x4 - core index']
  #allocation1 [shape = 'u32[144,128]{1,0:T(1,128)}', space=vmem, size = 0x12000, scoped, tag = 'internal scratch']
  %s0 = inlined_call_operand.vmem [shape: f32[1,1,8], index: 0, kind: input, shape index: {}]
  %s1 = inlined_call_operand.vmem [shape: f32[1,1,8], index: 1, kind: input, shape index: {}]
  %s2 = inlined_call_operand.vmem [shape: f32[4,128,8], index: 2, kind: input, shape index: {}]
  %s3 = inlined_call_operand.vmem [shape: f32[4,128,8], index: 3, kind: output, shape index: {}]
  %s4 = sld [smem:[#allocation0]]
  $region22: #{conv_bn_relu6.3} parent=0
    _
  %s6 = ssub.s32 1, %s4
  %s7 = scalar_select 0, %s6, %s4
  // Predicated region
  $region2: #{conv_bn_relu6.3} parent=0 // pred_check
    _
  $region3: #{conv_bn_relu6.3} parent=0 // pred_check_branch
    %9 = sbr.rel (0) target = $region5
  $region4: #{conv_bn_relu6.3} parent=0 // pred_region
    _
  $region5: #{conv_bn_relu6.3} parent=0 // pred_fallthru
    _
  // Predicated region
  $region6: #{conv_bn_relu6.3} parent=0 // pred_check
    _
  $region7: #{conv_bn_relu6.3} parent=0 // pred_check_branch
    %11 = sbr.rel (0) target = $region9
  $region8: #{conv_bn_relu6.3} parent=0 // pred_region
    _
  $region9: #{conv_bn_relu6.3} parent=0 // pred_fallthru
    _
  // Predicated region
  $region10: #{conv_bn_relu6.3} parent=0 // pred_check
    _
  $region11: #{conv_bn_relu6.3} parent=0 // pred_check_branch
    %13 = sbr.rel (0) target = $region13
  $region12: #{conv_bn_relu6.3} parent=0 // pred_region
    _
  $region13: #{conv_bn_relu6.3} parent=0 // pred_fallthru
    _
  %v14 = vld [vmem:[%s2] sm:$0xff]
  %v15 = vld [vmem:[%s2 + $0x8] sm:$0xff]
  %v16 = vld [vmem:[%s2 + $0x10] sm:$0xff]
  %v17 = vld [vmem:[%s2 + $0x18] sm:$0xff]
  %v18 = vld [vmem:[%s2 + $0x20] sm:$0xff]
  %v19 = vld [vmem:[%s2 + $0x28] sm:$0xff]
  %v20 = vld [vmem:[%s2 + $0x30] sm:$0xff]
  %v21 = vld [vmem:[%s2 + $0x38] sm:$0xff]
  %v22 = vld [vmem:[%s2 + $0x40] sm:$0xff]
  %v23 = vld [vmem:[%s2 + $0x48] sm:$0xff]
  %v24 = vld [vmem:[%s2 + $0x50] sm:$0xff]
  %v25 = vld [vmem:[%s2 + $0x58] sm:$0xff]
  %v26 = vld [vmem:[%s2 + $0x60] sm:$0xff]
  %v27 = vld [vmem:[%s2 + $0x68] sm:$0xff]
  %v28 = vld [vmem:[%s2 + $0x70] sm:$0xff]
  %v29 = vld [vmem:[%s2 + $0x78] sm:$0xff]
  %v30 = vld [vmem:[%s2 + $0x80] sm:$0xff]
  %v31 = vld [vmem:[%s2 + $0x88] sm:$0xff]
  %v32 = vld [vmem:[%s2 + $0x90] sm:$0xff]
  %v33 = vld [vmem:[%s2 + $0x98] sm:$0xff]
  %v34 = vld [vmem:[%s2 + $0xa0] sm:$0xff]
  %v35 = vld [vmem:[%s2 + $0xa8] sm:$0xff]
  %v36 = vld [vmem:[%s2 + $0xb0] sm:$0xff]
  %v37 = vld [vmem:[%s2 + $0xb8] sm:$0xff]
  %v38 = vld [vmem:[%s2 + $0xc0] sm:$0xff]
  %v39 = vld [vmem:[%s2 + $0xc8] sm:$0xff]
  %v40 = vld [vmem:[%s2 + $0xd0] sm:$0xff]
  %v41 = vld [vmem:[%s2 + $0xd8] sm:$0xff]
  %v42 = vld [vmem:[%s2 + $0xe0] sm:$0xff]
  %v43 = vld [vmem:[%s2 + $0xe8] sm:$0xff]
  %v44 = vld [vmem:[%s2 + $0xf0] sm:$0xff]
  %v45 = vld [vmem:[%s2 + $0xf8] sm:$0xff]
  %v46 = vld [vmem:[%s2 + $0x100] sm:$0xff]
  %v47 = vld [vmem:[%s2 + $0x108] sm:$0xff]
  %v48 = vld [vmem:[%s2 + $0x110] sm:$0xff]
  %v49 = vld [vmem:[%s2 + $0x118] sm:$0xff]
  %v50 = vld [vmem:[%s2 + $0x120] sm:$0xff]
  %v51 = vld [vmem:[%s2 + $0x128] sm:$0xff]
  %v52 = vld [vmem:[%s2 + $0x130] sm:$0xff]
  %v53 = vld [vmem:[%s2 + $0x138] sm:$0xff]
  %v54 = vld [vmem:[%s2 + $0x140] sm:$0xff]
  %v55 = vld [vmem:[%s2 + $0x148] sm:$0xff]
  %v56 = vld [vmem:[%s2 + $0x150] sm:$0xff]
  %v57 = vld [vmem:[%s2 + $0x158] sm:$0xff]
  %v58 = vld [vmem:[%s2 + $0x160] sm:$0xff]
  %v59 = vld [vmem:[%s2 + $0x168] sm:$0xff]
  %v60 = vld [vmem:[%s2 + $0x170] sm:$0xff]
  %v61 = vld [vmem:[%s2 + $0x178] sm:$0xff]
  %v62 = vld [vmem:[%s2 + $0x180] sm:$0xff]
  %v63 = vld [vmem:[%s2 + $0x188] sm:$0xff]
  %v64 = vld [vmem:[%s2 + $0x190] sm:$0xff]
  %v65 = vld [vmem:[%s2 + $0x198] sm:$0xff]
  %v66 = vld [vmem:[%s2 + $0x1a0] sm:$0xff]
  %v67 = vld [vmem:[%s2 + $0x1a8] sm:$0xff]
  %v68 = vld [vmem:[%s2 + $0x1b0] sm:$0xff]
  %v69 = vld [vmem:[%s2 + $0x1b8] sm:$0xff]
  %v70 = vld [vmem:[%s2 + $0x1c0] sm:$0xff]
  %v71 = vld [vmem:[%s2 + $0x1c8] sm:$0xff]
  %v72 = vld [vmem:[%s2 + $0x1d0] sm:$0xff]
  %v73 = vld [vmem:[%s2 + $0x1d8] sm:$0xff]
  %v74 = vld [vmem:[%s2 + $0x1e0] sm:$0xff]
  %v75 = vld [vmem:[%s2 + $0x1e8] sm:$0xff]
  %v76 = vld [vmem:[%s2 + $0x1f0] sm:$0xff]
  %v77 = vld [vmem:[%s2 + $0x1f8] sm:$0xff]
  %v78 = vld [vmem:[%s0] sm:$0x1]
  %v80 = vlaneseq
  %v81 = vshrl.u32 %v80, 7
  %v82 = vsub.s32 0, %v81
  %v83 = vrot.slane %v78, %v82
  %v85 = vmul.f32 %v14, %v83
  %v86 = vmul.f32 %v15, %v83
  %v87 = vmul.f32 %v16, %v83
  %v88 = vmul.f32 %v17, %v83
  %v89 = vmul.f32 %v18, %v83
  %v90 = vmul.f32 %v19, %v83
  %v91 = vmul.f32 %v20, %v83
  %v92 = vmul.f32 %v21, %v83
  %v93 = vmul.f32 %v22, %v83
  %v94 = vmul.f32 %v23, %v83
  %v95 = vmul.f32 %v24, %v83
  %v96 = vmul.f32 %v25, %v83
  %v97 = vmul.f32 %v26, %v83
  %v98 = vmul.f32 %v27, %v83
  %v99 = vmul.f32 %v28, %v83
  %v100 = vmul.f32 %v29, %v83
  %v101 = vmul.f32 %v30, %v83
  %v102 = vmul.f32 %v31, %v83
  %v103 = vmul.f32 %v32, %v83
  %v104 = vmul.f32 %v33, %v83
  %v105 = vmul.f32 %v34, %v83
  %v106 = vmul.f32 %v35, %v83
  %v107 = vmul.f32 %v36, %v83
  %v108 = vmul.f32 %v37, %v83
  %v109 = vmul.f32 %v38, %v83
  %v110 = vmul.f32 %v39, %v83
  %v111 = vmul.f32 %v40, %v83
  %v112 = vmul.f32 %v41, %v83
  %v113 = vmul.f32 %v42, %v83
  %v114 = vmul.f32 %v43, %v83
  %v115 = vmul.f32 %v44, %v83
  %v116 = vmul.f32 %v45, %v83
  %v117 = vmul.f32 %v46, %v83
  %v118 = vmul.f32 %v47, %v83
  %v119 = vmul.f32 %v48, %v83
  %v120 = vmul.f32 %v49, %v83
  %v121 = vmul.f32 %v50, %v83
  %v122 = vmul.f32 %v51, %v83
  %v123 = vmul.f32 %v52, %v83
  %v124 = vmul.f32 %v53, %v83
  %v125 = vmul.f32 %v54, %v83
  %v126 = vmul.f32 %v55, %v83
  %v127 = vmul.f32 %v56, %v83
  %v128 = vmul.f32 %v57, %v83
  %v129 = vmul.f32 %v58, %v83
  %v130 = vmul.f32 %v59, %v83
  %v131 = vmul.f32 %v60, %v83
  %v132 = vmul.f32 %v61, %v83
  %v133 = vmul.f32 %v62, %v83
  %v134 = vmul.f32 %v63, %v83
  %v135 = vmul.f32 %v64, %v83
  %v136 = vmul.f32 %v65, %v83
  %v137 = vmul.f32 %v66, %v83
  %v138 = vmul.f32 %v67, %v83
  %v139 = vmul.f32 %v68, %v83
  %v140 = vmul.f32 %v69, %v83
  %v141 = vmul.f32 %v70, %v83
  %v142 = vmul.f32 %v71, %v83
  %v143 = vmul.f32 %v72, %v83
  %v144 = vmul.f32 %v73, %v83
  %v145 = vmul.f32 %v74, %v83
  %v146 = vmul.f32 %v75, %v83
  %v147 = vmul.f32 %v76, %v83
  %v148 = vmul.f32 %v77, %v83
  %v149 = vld [vmem:[%s1] sm:$0x1]
  %v151 = vlaneseq
  %v152 = vshrl.u32 %v151, 7
  %v153 = vsub.s32 0, %v152
  %v154 = vrot.slane %v149, %v153
  %v156 = vadd.f32 %v85, %v154
  %v157 = vadd.f32 %v86, %v154
  %v158 = vadd.f32 %v87, %v154
  %v159 = vadd.f32 %v88, %v154
  %v160 = vadd.f32 %v89, %v154
  %v161 = vadd.f32 %v90, %v154
  %v162 = vadd.f32 %v91, %v154
  %v163 = vadd.f32 %v92, %v154
  %v164 = vadd.f32 %v93, %v154
  %v165 = vadd.f32 %v94, %v154
  %v166 = vadd.f32 %v95, %v154
  %v167 = vadd.f32 %v96, %v154
  %v168 = vadd.f32 %v97, %v154
  %v169 = vadd.f32 %v98, %v154
  %v170 = vadd.f32 %v99, %v154
  %v171 = vadd.f32 %v100, %v154
  %v172 = vadd.f32 %v101, %v154
  %v173 = vadd.f32 %v102, %v154
  %v174 = vadd.f32 %v103, %v154
  %v175 = vadd.f32 %v104, %v154
  %v176 = vadd.f32 %v105, %v154
  %v177 = vadd.f32 %v106, %v154
  %v178 = vadd.f32 %v107, %v154
  %v179 = vadd.f32 %v108, %v154
  %v180 = vadd.f32 %v109, %v154
  %v181 = vadd.f32 %v110, %v154
  %v182 = vadd.f32 %v111, %v154
  %v183 = vadd.f32 %v112, %v154
  %v184 = vadd.f32 %v113, %v154
  %v185 = vadd.f32 %v114, %v154
  %v186 = vadd.f32 %v115, %v154
  %v187 = vadd.f32 %v116, %v154
  %v188 = vadd.f32 %v117, %v154
  %v189 = vadd.f32 %v118, %v154
  %v190 = vadd.f32 %v119, %v154
  %v191 = vadd.f32 %v120, %v154
  %v192 = vadd.f32 %v121, %v154
  %v193 = vadd.f32 %v122, %v154
  %v194 = vadd.f32 %v123, %v154
  %v195 = vadd.f32 %v124, %v154
  %v196 = vadd.f32 %v125, %v154
  %v197 = vadd.f32 %v126, %v154
  %v198 = vadd.f32 %v127, %v154
  %v199 = vadd.f32 %v128, %v154
  %v200 = vadd.f32 %v129, %v154
  %v201 = vadd.f32 %v130, %v154
  %v202 = vadd.f32 %v131, %v154
  %v203 = vadd.f32 %v132, %v154
  %v204 = vadd.f32 %v133, %v154
  %v205 = vadd.f32 %v134, %v154
  %v206 = vadd.f32 %v135, %v154
  %v207 = vadd.f32 %v136, %v154
  %v208 = vadd.f32 %v137, %v154
  %v209 = vadd.f32 %v138, %v154
  %v210 = vadd.f32 %v139, %v154
  %v211 = vadd.f32 %v140, %v154
  %v212 = vadd.f32 %v141, %v154
  %v213 = vadd.f32 %v142, %v154
  %v214 = vadd.f32 %v143, %v154
  %v215 = vadd.f32 %v144, %v154
  %v216 = vadd.f32 %v145, %v154
  %v217 = vadd.f32 %v146, %v154
  %v218 = vadd.f32 %v147, %v154
  %v219 = vadd.f32 %v148, %v154
  %v220 = vmax.f32 %v156, 0.0
  %v221 = vmax.f32 %v157, 0.0
  %v222 = vmax.f32 %v158, 0.0
  %v223 = vmax.f32 %v159, 0.0
  %v224 = vmax.f32 %v160, 0.0
  %v225 = vmax.f32 %v161, 0.0
  %v226 = vmax.f32 %v162, 0.0
  %v227 = vmax.f32 %v163, 0.0
  %v228 = vmax.f32 %v164, 0.0
  %v229 = vmax.f32 %v165, 0.0
  %v230 = vmax.f32 %v166, 0.0
  %v231 = vmax.f32 %v167, 0.0
  %v232 = vmax.f32 %v168, 0.0
  %v233 = vmax.f32 %v169, 0.0
  %v234 = vmax.f32 %v170, 0.0
  %v235 = vmax.f32 %v171, 0.0
  %v236 = vmax.f32 %v172, 0.0
  %v237 = vmax.f32 %v173, 0.0
  %v238 = vmax.f32 %v174, 0.0
  %v239 = vmax.f32 %v175, 0.0
  %v240 = vmax.f32 %v176, 0.0
  %v241 = vmax.f32 %v177, 0.0
  %v242 = vmax.f32 %v178, 0.0
  %v243 = vmax.f32 %v179, 0.0
  %v244 = vmax.f32 %v180, 0.0
  %v245 = vmax.f32 %v181, 0.0
  %v246 = vmax.f32 %v182, 0.0
  %v247 = vmax.f32 %v183, 0.0
  %v248 = vmax.f32 %v184, 0.0
  %v249 = vmax.f32 %v185, 0.0
  %v250 = vmax.f32 %v186, 0.0
  %v251 = vmax.f32 %v187, 0.0
  %v252 = vmax.f32 %v188, 0.0
  %v253 = vmax.f32 %v189, 0.0
  %v254 = vmax.f32 %v190, 0.0
  %v255 = vmax.f32 %v191, 0.0
  %v256 = vmax.f32 %v192, 0.0
  %v257 = vmax.f32 %v193, 0.0
  %v258 = vmax.f32 %v194, 0.0
  %v259 = vmax.f32 %v195, 0.0
  %v260 = vmax.f32 %v196, 0.0
  %v261 = vmax.f32 %v197, 0.0
  %v262 = vmax.f32 %v198, 0.0
  %v263 = vmax.f32 %v199, 0.0
  %v264 = vmax.f32 %v200, 0.0
  %v265 = vmax.f32 %v201, 0.0
  %v266 = vmax.f32 %v202, 0.0
  %v267 = vmax.f32 %v203, 0.0
  %v268 = vmax.f32 %v204, 0.0
  %v269 = vmax.f32 %v205, 0.0
  %v270 = vmax.f32 %v206, 0.0
  %v271 = vmax.f32 %v207, 0.0
  %v272 = vmax.f32 %v208, 0.0
  %v273 = vmax.f32 %v209, 0.0
  %v274 = vmax.f32 %v210, 0.0
  %v275 = vmax.f32 %v211, 0.0
  %v276 = vmax.f32 %v212, 0.0
  %v277 = vmax.f32 %v213, 0.0
  %v278 = vmax.f32 %v214, 0.0
  %v279 = vmax.f32 %v215, 0.0
  %v280 = vmax.f32 %v216, 0.0
  %v281 = vmax.f32 %v217, 0.0
  %v282 = vmax.f32 %v218, 0.0
  %v283 = vmax.f32 %v219, 0.0
  %v284 = vmin.f32 %v220, 6.0
  %v285 = vmin.f32 %v221, 6.0
  %v286 = vmin.f32 %v222, 6.0
  %v287 = vmin.f32 %v223, 6.0
  %v288 = vmin.f32 %v224, 6.0
  %v289 = vmin.f32 %v225, 6.0
  %v290 = vmin.f32 %v226, 6.0
  %v291 = vmin.f32 %v227, 6.0
  %v292 = vmin.f32 %v228, 6.0
  %v293 = vmin.f32 %v229, 6.0
  %v294 = vmin.f32 %v230, 6.0
  %v295 = vmin.f32 %v231, 6.0
  %v296 = vmin.f32 %v232, 6.0
  %v297 = vmin.f32 %v233, 6.0
  %v298 = vmin.f32 %v234, 6.0
  %v299 = vmin.f32 %v235, 6.0
  %v300 = vmin.f32 %v236, 6.0
  %v301 = vmin.f32 %v237, 6.0
  %v302 = vmin.f32 %v238, 6.0
  %v303 = vmin.f32 %v239, 6.0
  %v304 = vmin.f32 %v240, 6.0
  %v305 = vmin.f32 %v241, 6.0
  %v306 = vmin.f32 %v242, 6.0
  %v307 = vmin.f32 %v243, 6.0
  %v308 = vmin.f32 %v244, 6.0
  %v309 = vmin.f32 %v245, 6.0
  %v310 = vmin.f32 %v246, 6.0
  %v311 = vmin.f32 %v247, 6.0
  %v312 = vmin.f32 %v248, 6.0
  %v313 = vmin.f32 %v249, 6.0
  %v314 = vmin.f32 %v250, 6.0
  %v315 = vmin.f32 %v251, 6.0
  %v316 = vmin.f32 %v252, 6.0
  %v317 = vmin.f32 %v253, 6.0
  %v318 = vmin.f32 %v254, 6.0
  %v319 = vmin.f32 %v255, 6.0
  %v320 = vmin.f32 %v256, 6.0
  %v321 = vmin.f32 %v257, 6.0
  %v322 = vmin.f32 %v258, 6.0
  %v323 = vmin.f32 %v259, 6.0
  %v324 = vmin.f32 %v260, 6.0
  %v325 = vmin.f32 %v261, 6.0
  %v326 = vmin.f32 %v262, 6.0
  %v327 = vmin.f32 %v263, 6.0
  %v328 = vmin.f32 %v264, 6.0
  %v329 = vmin.f32 %v265, 6.0
  %v330 = vmin.f32 %v266, 6.0
  %v331 = vmin.f32 %v267, 6.0
  %v332 = vmin.f32 %v268, 6.0
  %v333 = vmin.f32 %v269, 6.0
  %v334 = vmin.f32 %v270, 6.0
  %v335 = vmin.f32 %v271, 6.0
  %v336 = vmin.f32 %v272, 6.0
  %v337 = vmin.f32 %v273, 6.0
  %v338 = vmin.f32 %v274, 6.0
  %v339 = vmin.f32 %v275, 6.0
  %v340 = vmin.f32 %v276, 6.0
  %v341 = vmin.f32 %v277, 6.0
  %v342 = vmin.f32 %v278, 6.0
  %v343 = vmin.f32 %v279, 6.0
  %v344 = vmin.f32 %v280, 6.0
  %v345 = vmin.f32 %v281, 6.0
  %v346 = vmin.f32 %v282, 6.0
  %v347 = vmin.f32 %v283, 6.0
  %vm348 = vcmask 64512
  %349 = vst.msk [vmem:[%s3] sm:$0xff] %vm348, %v284
  %350 = vst.msk [vmem:[%s3 + $0x8] sm:$0xff] %vm348, %v285
  %351 = vst.msk [vmem:[%s3 + $0x10] sm:$0xff] %vm348, %v286
  %352 = vst.msk [vmem:[%s3 + $0x18] sm:$0xff] %vm348, %v287
  %353 = vst.msk [vmem:[%s3 + $0x20] sm:$0xff] %vm348, %v288
  %354 = vst.msk [vmem:[%s3 + $0x28] sm:$0xff] %vm348, %v289
  %355 = vst.msk [vmem:[%s3 + $0x30] sm:$0xff] %vm348, %v290
  %356 = vst.msk [vmem:[%s3 + $0x38] sm:$0xff] %vm348, %v291
  %357 = vst.msk [vmem:[%s3 + $0x40] sm:$0xff] %vm348, %v292
  %358 = vst.msk [vmem:[%s3 + $0x48] sm:$0xff] %vm348, %v293
  %359 = vst.msk [vmem:[%s3 + $0x50] sm:$0xff] %vm348, %v294
  %360 = vst.msk [vmem:[%s3 + $0x58] sm:$0xff] %vm348, %v295
  %361 = vst.msk [vmem:[%s3 + $0x60] sm:$0xff] %vm348, %v296
  %362 = vst.msk [vmem:[%s3 + $0x68] sm:$0xff] %vm348, %v297
  %363 = vst.msk [vmem:[%s3 + $0x70] sm:$0xff] %vm348, %v298
  %364 = vst.msk [vmem:[%s3 + $0x78] sm:$0xff] %vm348, %v299
  %365 = vst.msk [vmem:[%s3 + $0x80] sm:$0xff] %vm348, %v300
  %366 = vst.msk [vmem:[%s3 + $0x88] sm:$0xff] %vm348, %v301
  %367 = vst.msk [vmem:[%s3 + $0x90] sm:$0xff] %vm348, %v302
  %368 = vst.msk [vmem:[%s3 + $0x98] sm:$0xff] %vm348, %v303
  %369 = vst.msk [vmem:[%s3 + $0xa0] sm:$0xff] %vm348, %v304
  %370 = vst.msk [vmem:[%s3 + $0xa8] sm:$0xff] %vm348, %v305
  %371 = vst.msk [vmem:[%s3 + $0xb0] sm:$0xff] %vm348, %v306
  %372 = vst.msk [vmem:[%s3 + $0xb8] sm:$0xff] %vm348, %v307
  %373 = vst.msk [vmem:[%s3 + $0xc0] sm:$0xff] %vm348, %v308
  %374 = vst.msk [vmem:[%s3 + $0xc8] sm:$0xff] %vm348, %v309
  %375 = vst.msk [vmem:[%s3 + $0xd0] sm:$0xff] %vm348, %v310
  %376 = vst.msk [vmem:[%s3 + $0xd8] sm:$0xff] %vm348, %v311
  %377 = vst.msk [vmem:[%s3 + $0xe0] sm:$0xff] %vm348, %v312
  %378 = vst.msk [vmem:[%s3 + $0xe8] sm:$0xff] %vm348, %v313
  %379 = vst.msk [vmem:[%s3 + $0xf0] sm:$0xff] %vm348, %v314
  %380 = vst.msk [vmem:[%s3 + $0xf8] sm:$0xff] %vm348, %v315
  %381 = vst.msk [vmem:[%s3 + $0x100] sm:$0xff] %vm348, %v316
  %382 = vst.msk [vmem:[%s3 + $0x108] sm:$0xff] %vm348, %v317
  %383 = vst.msk [vmem:[%s3 + $0x110] sm:$0xff] %vm348, %v318
  %384 = vst.msk [vmem:[%s3 + $0x118] sm:$0xff] %vm348, %v319
  %385 = vst.msk [vmem:[%s3 + $0x120] sm:$0xff] %vm348, %v320
  %386 = vst.msk [vmem:[%s3 + $0x128] sm:$0xff] %vm348, %v321
  %387 = vst.msk [vmem:[%s3 + $0x130] sm:$0xff] %vm348, %v322
  %388 = vst.msk [vmem:[%s3 + $0x138] sm:$0xff] %vm348, %v323
  %389 = vst.msk [vmem:[%s3 + $0x140] sm:$0xff] %vm348, %v324
  %390 = vst.msk [vmem:[%s3 + $0x148] sm:$0xff] %vm348, %v325
  %391 = vst.msk [vmem:[%s3 + $0x150] sm:$0xff] %vm348, %v326
  %392 = vst.msk [vmem:[%s3 + $0x158] sm:$0xff] %vm348, %v327
  %393 = vst.msk [vmem:[%s3 + $0x160] sm:$0xff] %vm348, %v328
  %394 = vst.msk [vmem:[%s3 + $0x168] sm:$0xff] %vm348, %v329
  %395 = vst.msk [vmem:[%s3 + $0x170] sm:$0xff] %vm348, %v330
  %396 = vst.msk [vmem:[%s3 + $0x178] sm:$0xff] %vm348, %v331
  %397 = vst.msk [vmem:[%s3 + $0x180] sm:$0xff] %vm348, %v332
  %398 = vst.msk [vmem:[%s3 + $0x188] sm:$0xff] %vm348, %v333
  %399 = vst.msk [vmem:[%s3 + $0x190] sm:$0xff] %vm348, %v334
  %400 = vst.msk [vmem:[%s3 + $0x198] sm:$0xff] %vm348, %v335
  %401 = vst.msk [vmem:[%s3 + $0x1a0] sm:$0xff] %vm348, %v336
  %402 = vst.msk [vmem:[%s3 + $0x1a8] sm:$0xff] %vm348, %v337
  %403 = vst.msk [vmem:[%s3 + $0x1b0] sm:$0xff] %vm348, %v338
  %404 = vst.msk [vmem:[%s3 + $0x1b8] sm:$0xff] %vm348, %v339
  %405 = vst.msk [vmem:[%s3 + $0x1c0] sm:$0xff] %vm348, %v340
  %406 = vst.msk [vmem:[%s3 + $0x1c8] sm:$0xff] %vm348, %v341
  %407 = vst.msk [vmem:[%s3 + $0x1d0] sm:$0xff] %vm348, %v342
  %408 = vst.msk [vmem:[%s3 + $0x1d8] sm:$0xff] %vm348, %v343
  %409 = vst.msk [vmem:[%s3 + $0x1e0] sm:$0xff] %vm348, %v344
  %410 = vst.msk [vmem:[%s3 + $0x1e8] sm:$0xff] %vm348, %v345
  %411 = vst.msk [vmem:[%s3 + $0x1f0] sm:$0xff] %vm348, %v346
  %412 = vst.msk [vmem:[%s3 + $0x1f8] sm:$0xff] %vm348, %v347
  // Predicated region
  $region14: #{conv_bn_relu6.3} parent=0 // pred_check
    _
  $region15: #{conv_bn_relu6.3} parent=0 // pred_check_branch
    %414 = sbr.rel (0) target = $region17
  $region16: #{conv_bn_relu6.3} parent=0 // pred_region
    _
  $region17: #{conv_bn_relu6.3} parent=0 // pred_fallthru
    _
  // Predicated region
  $region18: #{conv_bn_relu6.3} parent=0 // pred_check
    _
  $region19: #{conv_bn_relu6.3} parent=0 // pred_check_branch
    %416 = sbr.rel (0) target = $region21
  $region20: #{conv_bn_relu6.3} parent=0 // pred_region
    _
  $region21: #{conv_bn_relu6.3} parent=0 // pred_fallthru
    _

</llo_original>
